<compile_context>
chip_gen: v7x
topology: tpu7x:2x2x1
jax: 0.10.0
libtpu: 0.0.40
codegen_flags: <defaults>
</compile_context>

<pallas_src>
import functools

import jax
import jax.numpy as jnp
from jax import lax
from jax.experimental import pallas as pl
from jax.experimental.pallas import tpu as pltpu

CFG = dict(
    vocab_size=64,
    context_length=8,
    emb_dim=32,
    n_heads=4,
    n_layers=2,
    drop_rate=0.0,
    qkv_bias=False,
)
EPS = 1e-5
VP = 128  # lane-padded LM-head width (vocab 64 -> 128 lanes, unmasked stores)


# ---------------------------------------------------------------------------
# In-kernel helpers (traced inside the Pallas kernel body)
# ---------------------------------------------------------------------------
def _layernorm(x, scale, shift, eps=EPS):
    # Matches PyTorch: torch.var(dim=-1) defaults to unbiased (ddof=1).
    d = x.shape[-1]
    mean = jnp.mean(x, axis=-1, keepdims=True)
    var = jnp.sum((x - mean) ** 2, axis=-1, keepdims=True) * (1.0 / (d - 1))
    x_norm = (x - mean) * lax.rsqrt(var + eps)          # rsqrt -> EUP slot
    return scale * x_norm + shift


def _gelu_tanh(x):
    c = 0.7978845608028654  # sqrt(2/pi)
    return 0.5 * x * (1.0 + jnp.tanh(c * (x + 0.044715 * x * x * x)))


def _bf16(x):
    return x.astype(jnp.bfloat16)


# ---------------------------------------------------------------------------
# Fused GPT kernel: grid=(n_layers,), activation resident in VMEM scratch
# ---------------------------------------------------------------------------
def gpt_kernel(
    idx_ref, pos_ref, tok_emb_ref, hmask_ref, bias_ref,
    ln1_s_ref, ln1_b_ref, ln2_s_ref, ln2_b_ref,
    wqkv_ref, wo_ref, bo_ref, w1_ref, b1_ref, w2_ref, b2_ref,
    lnf_s_ref, lnf_b_ref, whead_ref,
    o_ref,
    x_scr,
    *, num_heads, seq_len,
):
    l = pl.program_id(0)
    BT, D = x_scr.shape
    T = seq_len
    B = BT // T
    H = num_heads
    Dh = D // H
    f32 = jnp.float32

    # ---- step 0: token-embedding gather (one-hot matmul, exact) + pos add ----
    @pl.when(l == 0)
    def _():
        V = tok_emb_ref.shape[0]
        ids = idx_ref[...]                                       # (BT, 1) int32
        cols = lax.broadcasted_iota(jnp.int32, (BT, V), 1)
        onehot = (ids == cols).astype(f32)                       # (BT, V)
        tok = jnp.dot(onehot, tok_emb_ref[...], preferred_element_type=f32)
        x_scr[...] = tok + pos_ref[...]
        # TODO(synk): drop_emb omitted (dropout rate 0.0 / eval mode).

    x = x_scr[...]                                               # (BT, D) f32
    hmask = hmask_ref[...]                                       # (H*T, D) block-diagonal

    # ---- attention sublayer: all heads in one batched matmul pair ----
    xn = _layernorm(x, ln1_s_ref[...], ln1_b_ref[...])
    qkv = jnp.dot(_bf16(xn), _bf16(wqkv_ref[...]),
                  preferred_element_type=f32)                    # (BT, 3D)
    inv_scale = 1.0 / (float(Dh) ** 0.5)
    q = qkv[:, :D] * inv_scale                                   # pre-scale q once
    k = qkv[:, D:2 * D]
    v = qkv[:, 2 * D:]

    q3 = q.reshape(B, T, D)
    k3 = k.reshape(B, T, D)
    v3 = v.reshape(B, T, D)

    # Replicate queries H times along the row axis and block-diagonal-mask the
    # lane axis: one (B, H*T, T) einsum then yields every head's scores.
    q_rep = jnp.concatenate([q3] * H, axis=1)                    # (B, H*T, D)
    q_exp = q_rep * hmask[None, :, :]
    s = jnp.einsum('bqd,bkd->bqk', _bf16(q_exp), _bf16(k3),
                   preferred_element_type=f32)                   # (B, H*T, T)
    s = s + bias_ref[...][None, :, :]                            # additive causal mask
    m = jnp.max(s, axis=-1, keepdims=True)
    p = jnp.exp(s - m)
    denom = jnp.sum(p, axis=-1, keepdims=True)
    w = p * pl.reciprocal(denom, approx=True)                    # EUP reciprocal
    ctx_all = jnp.einsum('bqk,bkd->bqd', _bf16(w), _bf16(v3),
                         preferred_element_type=f32)             # (B, H*T, D)
    ctx_sel = ctx_all * hmask[None, :, :]
    # Fold the H row-blocks back into one (B, T, D) context (lane blocks are
    # disjoint, so this is just H-1 vector adds — no per-head matmuls).
    ctx = ctx_sel[:, 0:T, :]
    for h in range(1, H):
        ctx = ctx + ctx_sel[:, h * T:(h + 1) * T, :]
    ctx2 = ctx.reshape(BT, D)

    att = jnp.dot(_bf16(ctx2), _bf16(wo_ref[...]),
                  preferred_element_type=f32) + bo_ref[...]
    # TODO(synk): attention dropout / drop_shortcut omitted (rate 0.0 / eval).
    x = x + att

    # ---- feed-forward sublayer ----
    xn2 = _layernorm(x, ln2_s_ref[...], ln2_b_ref[...])
    h1 = jnp.dot(_bf16(xn2), _bf16(w1_ref[...]),
                 preferred_element_type=f32) + b1_ref[...]
    h1 = _gelu_tanh(h1)
    h2 = jnp.dot(_bf16(h1), _bf16(w2_ref[...]),
                 preferred_element_type=f32) + b2_ref[...]
    x = x + h2
    x_scr[...] = x                                               # carry to next layer

    # ---- last step: final LayerNorm + (lane-padded) LM head ----
    @pl.when(l == pl.num_programs(0) - 1)
    def _():
        xf = _layernorm(x, lnf_s_ref[...], lnf_b_ref[...])
        o_ref[...] = jnp.dot(_bf16(xf), _bf16(whead_ref[...]),
                             preferred_element_type=f32)         # (BT, 128)


# ---------------------------------------------------------------------------
# Parameter init (deterministic, synthetic; weights pre-transposed to (in,out))
# ---------------------------------------------------------------------------
def init_params(key, cfg):
    D, V, C = cfg['emb_dim'], cfg['vocab_size'], cfg['context_length']
    L, Dff = cfg['n_layers'], 4 * cfg['emb_dim']
    keys = iter(jax.random.split(key, 3 + 6 * L))

    def nrm(k, shape, scale=0.02):
        return (scale * jax.random.normal(k, shape)).astype(jnp.float32)

    tok_emb = nrm(next(keys), (V, D), 1.0)
    pos_emb = nrm(next(keys), (C, D), 1.0)
    w_head = nrm(next(keys), (D, V))

    wqkv, wo, w1, w2 = [], [], [], []
    for _ in range(L):
        wq = nrm(next(keys), (D, D))
        wk = nrm(next(keys), (D, D))
        wv = nrm(next(keys), (D, D))
        wqkv.append(jnp.concatenate([wq, wk, wv], axis=1))       # fused QKV (D, 3D)
        wo.append(nrm(next(keys), (D, D)))
        w1.append(nrm(next(keys), (D, Dff)))
        w2.append(nrm(next(keys), (Dff, D)))

    return dict(
        tok_emb=tok_emb,
        pos_emb=pos_emb,
        ln1_s=jnp.ones((L, 1, D), jnp.float32),
        ln1_b=jnp.zeros((L, 1, D), jnp.float32),
        ln2_s=jnp.ones((L, 1, D), jnp.float32),
        ln2_b=jnp.zeros((L, 1, D), jnp.float32),
        wqkv=jnp.stack(wqkv),
        wo=jnp.stack(wo),
        bo=jnp.zeros((L, 1, D), jnp.float32),
        w1=jnp.stack(w1),
        b1=jnp.zeros((L, 1, Dff), jnp.float32),
        w2=jnp.stack(w2),
        b2=jnp.zeros((L, 1, D), jnp.float32),
        lnf_s=jnp.ones((1, D), jnp.float32),
        lnf_b=jnp.zeros((1, D), jnp.float32),
        # LM head zero-padded to 128 lanes -> unmasked lane-dense output store.
        w_head=jnp.zeros((D, VP), jnp.float32).at[:, :V].set(w_head),
    )


# ---------------------------------------------------------------------------
# Forward wrapper: single pallas_call for the whole model
# ---------------------------------------------------------------------------
@jax.jit
def gpt_forward(in_idx, params):
    B, T = in_idx.shape
    V, D = params['tok_emb'].shape
    H = CFG['n_heads']
    Dh = D // H
    L = params['wqkv'].shape[0]
    Dff = params['w1'].shape[-1]
    Vp = params['w_head'].shape[-1]
    BT = B * T

    idx = in_idx.reshape(BT, 1).astype(jnp.int32)
    pos = jnp.tile(params['pos_emb'][:T], (B, 1)).astype(jnp.float32)    # (BT, D)

    # Block-diagonal head mask replicated to (H*T, D): row h*T+t selects head h lanes.
    head_mask = jnp.repeat(jnp.eye(H, dtype=jnp.float32), Dh, axis=1)    # (H, D)
    hmask = jnp.repeat(head_mask, T, axis=0)                             # (H*T, D)
    # Additive causal bias tiled over heads: (H*T, T).
    qpos = jnp.tile(jnp.arange(T, dtype=jnp.int32), H)[:, None]
    kpos = jnp.arange(T, dtype=jnp.int32)[None, :]
    attn_bias = jnp.where(kpos > qpos, jnp.float32(-1e30), jnp.float32(0.0))

    kernel = functools.partial(gpt_kernel, num_heads=H, seq_len=T)

    def const(shape):
        return pl.BlockSpec(shape, lambda l, _n=len(shape): (0,) * _n)

    def per_layer(*tail):
        return pl.BlockSpec((None,) + tail, lambda l, _n=len(tail): (l,) + (0,) * _n)

    in_specs = [
        const((BT, 1)),            # idx
        const((BT, D)),            # pos (tiled over batch)
        const((V, D)),             # tok_emb
        const((H * T, D)),         # head mask
        const((H * T, T)),         # causal additive bias
        per_layer(1, D),           # ln1_s
        per_layer(1, D),           # ln1_b
        per_layer(1, D),           # ln2_s
        per_layer(1, D),           # ln2_b
        per_layer(D, 3 * D),       # wqkv
        per_layer(D, D),           # wo
        per_layer(1, D),           # bo
        per_layer(D, Dff),         # w1
        per_layer(1, Dff),         # b1
        per_layer(Dff, D),         # w2
        per_layer(1, D),           # b2
        const((1, D)),             # lnf_s
        const((1, D)),             # lnf_b
        const((D, Vp)),            # w_head (padded)
    ]
    out_spec = pl.BlockSpec((BT, Vp), lambda l: (0, 0))

    logits_pad = pl.pallas_call(
        kernel,
        out_shape=jax.ShapeDtypeStruct((BT, Vp), jnp.float32),
        grid_spec=pltpu.PrefetchScalarGridSpec(
            num_scalar_prefetch=0,
            grid=(L,),
            in_specs=in_specs,
            out_specs=out_spec,
            scratch_shapes=[pltpu.VMEM((BT, D), jnp.float32)],   # resident activation
        ),
        compiler_params=pltpu.CompilerParams(
            dimension_semantics=("arbitrary",)),                 # layer axis carries state
    )(idx, pos, params['tok_emb'], hmask, attn_bias,
      params['ln1_s'], params['ln1_b'], params['ln2_s'], params['ln2_b'],
      params['wqkv'], params['wo'], params['bo'],
      params['w1'], params['b1'], params['w2'], params['b2'],
      params['lnf_s'], params['lnf_b'], params['w_head'])

    return logits_pad[:, :V].reshape(B, T, V)


if __name__ == "__main__":
    key = jax.random.PRNGKey(0)
    pkey, ikey = jax.random.split(key)
    params = init_params(pkey, CFG)

    B, T = 2, CFG['context_length']
    in_idx = jax.random.randint(ikey, (B, T), 0, CFG['vocab_size'], dtype=jnp.int32)

    logits = gpt_forward(in_idx, params)
    jax.block_until_ready(logits)
    assert logits.shape == (B, T, CFG['vocab_size'])
    assert bool(jnp.all(jnp.isfinite(logits)))
    print("KERNEL_OK")
</pallas_src>

<mosaic_0001>
module attributes {stable_mosaic.version = 11 : i64} {
  func.func @gpt_kernel(%arg0: i32, %arg1: memref<16x1xi32, #tpu.memory_space<vmem>>, %arg2: memref<16x32xf32, #tpu.memory_space<vmem>>, %arg3: memref<64x32xf32, #tpu.memory_space<vmem>>, %arg4: memref<32x32xf32, #tpu.memory_space<vmem>>, %arg5: memref<32x8xf32, #tpu.memory_space<vmem>>, %arg6: memref<1x1x32xf32, #tpu.memory_space<vmem>>, %arg7: memref<1x1x32xf32, #tpu.memory_space<vmem>>, %arg8: memref<1x1x32xf32, #tpu.memory_space<vmem>>, %arg9: memref<1x1x32xf32, #tpu.memory_space<vmem>>, %arg10: memref<1x32x96xf32, #tpu.memory_space<vmem>>, %arg11: memref<1x32x32xf32, #tpu.memory_space<vmem>>, %arg12: memref<1x1x32xf32, #tpu.memory_space<vmem>>, %arg13: memref<1x32x128xf32, #tpu.memory_space<vmem>>, %arg14: memref<1x1x128xf32, #tpu.memory_space<vmem>>, %arg15: memref<1x128x32xf32, #tpu.memory_space<vmem>>, %arg16: memref<1x1x32xf32, #tpu.memory_space<vmem>>, %arg17: memref<1x32xf32, #tpu.memory_space<vmem>>, %arg18: memref<1x32xf32, #tpu.memory_space<vmem>>, %arg19: memref<32x128xf32, #tpu.memory_space<vmem>>, %arg20: memref<16x128xf32, #tpu.memory_space<vmem>>, %arg21: memref<16x32xf32, #tpu.memory_space<vmem>>) attributes {dimension_semantics = [#tpu.dimension_semantics<arbitrary>], iteration_bounds = array<i64: 2>, scalar_prefetch = 0 : i64, scratch_operands = 1 : i64, tpu.core_type = #tpu.core_type<tc>, window_params = [{pipeline_mode = #tpu.pipeline_mode<synchronous>, transform_indices = @transform_0, window_bounds = array<i64: 16, 1>}, {pipeline_mode = #tpu.pipeline_mode<synchronous>, transform_indices = @transform_1, window_bounds = array<i64: 16, 32>}, {pipeline_mode = #tpu.pipeline_mode<synchronous>, transform_indices = @transform_2, window_bounds = array<i64: 64, 32>}, {pipeline_mode = #tpu.pipeline_mode<synchronous>, transform_indices = @transform_3, window_bounds = array<i64: 32, 32>}, {pipeline_mode = #tpu.pipeline_mode<synchronous>, transform_indices = @transform_4, window_bounds = array<i64: 32, 8>}, {transform_indices = @transform_5, window_bounds = array<i64: 1, 1, 32>}, {transform_indices = @transform_6, window_bounds = array<i64: 1, 1, 32>}, {transform_indices = @transform_7, window_bounds = array<i64: 1, 1, 32>}, {transform_indices = @transform_8, window_bounds = array<i64: 1, 1, 32>}, {transform_indices = @transform_9, window_bounds = array<i64: 1, 32, 96>}, {transform_indices = @transform_10, window_bounds = array<i64: 1, 32, 32>}, {transform_indices = @transform_11, window_bounds = array<i64: 1, 1, 32>}, {transform_indices = @transform_12, window_bounds = array<i64: 1, 32, 128>}, {transform_indices = @transform_13, window_bounds = array<i64: 1, 1, 128>}, {transform_indices = @transform_14, window_bounds = array<i64: 1, 128, 32>}, {transform_indices = @transform_15, window_bounds = array<i64: 1, 1, 32>}, {pipeline_mode = #tpu.pipeline_mode<synchronous>, transform_indices = @transform_16, window_bounds = array<i64: 1, 32>}, {pipeline_mode = #tpu.pipeline_mode<synchronous>, transform_indices = @transform_17, window_bounds = array<i64: 1, 32>}, {pipeline_mode = #tpu.pipeline_mode<synchronous>, transform_indices = @transform_18, window_bounds = array<i64: 32, 128>}, {pipeline_mode = #tpu.pipeline_mode<synchronous>, transform_indices = @transform_19, window_bounds = array<i64: 16, 128>}]} {
    %c0_i32 = arith.constant 0 : i32
    %0 = arith.cmpi eq, %arg0, %c0_i32 : i32
    %1 = arith.extui %0 : i1 to i32
    %c0_i32_0 = arith.constant 0 : i32
    %2 = arith.cmpi ne, %1, %c0_i32_0 : i32
    scf.if %2 {
      %c0_64 = arith.constant 0 : index
      %c0_65 = arith.constant 0 : index
      %151 = vector.load %arg1[%c0_64, %c0_65] : memref<16x1xi32, #tpu.memory_space<vmem>>, vector<16x1xi32>
      %152 = tpu.iota {dimensions = array<i32: 1>} : vector<16x64xi32>
      %153 = vector.broadcast %151 : vector<16x1xi32> to vector<16x64xi32>
      %154 = arith.cmpi eq, %153, %152 : vector<16x64xi32>
      %155 = arith.extui %154 : vector<16x64xi1> to vector<16x64xi32>
      %156 = arith.sitofp %155 : vector<16x64xi32> to vector<16x64xf32>
      %c0_66 = arith.constant 0 : index
      %c0_67 = arith.constant 0 : index
      %157 = vector.load %arg3[%c0_66, %c0_67] : memref<64x32xf32, #tpu.memory_space<vmem>>, vector<64x32xf32>
      %cst_68 = arith.constant dense<0.000000e+00> : vector<16x32xf32>
      %158 = tpu.matmul %156, %157, %cst_68 {dimension_numbers = #tpu.dot_dimension_numbers<[1], [0], [0], [1], [0, 0, 1, 1], [], []>} : vector<16x64xf32>, vector<64x32xf32>, vector<16x32xf32> -> vector<16x32xf32>
      %c0_69 = arith.constant 0 : index
      %c0_70 = arith.constant 0 : index
      %159 = vector.load %arg2[%c0_69, %c0_70] : memref<16x32xf32, #tpu.memory_space<vmem>>, vector<16x32xf32>
      %160 = arith.addf %158, %159 : vector<16x32xf32>
      %c0_71 = arith.constant 0 : index
      %c0_72 = arith.constant 0 : index
      %161 = vector.load %arg21[%c0_71, %c0_72] : memref<16x32xf32, #tpu.memory_space<vmem>>, vector<16x32xf32>
      tpu.vector_store %arg21[%c0_71, %c0_72], %160 {strides = array<i32>} : memref<16x32xf32, #tpu.memory_space<vmem>>, vector<16x32xf32>,
    } else {
    }
    %c0 = arith.constant 0 : index
    %c0_1 = arith.constant 0 : index
    %3 = vector.load %arg21[%c0, %c0_1] : memref<16x32xf32, #tpu.memory_space<vmem>>, vector<16x32xf32>
    %c0_2 = arith.constant 0 : index
    %c0_3 = arith.constant 0 : index
    %4 = vector.load %arg4[%c0_2, %c0_3] : memref<32x32xf32, #tpu.memory_space<vmem>>, vector<32x32xf32>
    %c0_4 = arith.constant 0 : index
    %c0_5 = arith.constant 0 : index
    %c0_6 = arith.constant 0 : index
    %5 = vector.load %arg6[%c0_4, %c0_5, %c0_6] : memref<1x1x32xf32, #tpu.memory_space<vmem>>, vector<1x1x32xf32>
    %6 = vector.shape_cast %5 : vector<1x1x32xf32> to vector<1x32xf32>
    %c0_7 = arith.constant 0 : index
    %c0_8 = arith.constant 0 : index
    %c0_9 = arith.constant 0 : index
    %7 = vector.load %arg7[%c0_7, %c0_8, %c0_9] : memref<1x1x32xf32, #tpu.memory_space<vmem>>, vector<1x1x32xf32>
    %8 = vector.shape_cast %7 : vector<1x1x32xf32> to vector<1x32xf32>
    %cst = arith.constant dense<0.000000e+00> : vector<16xf32>
    %9 = vector.multi_reduction <add>, %3, %cst [1] : vector<16x32xf32> to vector<16xf32>
    %10 = vector.shape_cast %9 : vector<16xf32> to vector<16x1xf32>
    %cst_10 = arith.constant 3.200000e+01 : f32
    %11 = vector.broadcast %cst_10 : f32 to vector<16x1xf32>
    %12 = arith.divf %10, %11 : vector<16x1xf32>
    %13 = vector.broadcast %12 : vector<16x1xf32> to vector<16x32xf32>
    %14 = arith.subf %3, %13 : vector<16x32xf32>
    %15 = arith.mulf %14, %14 : vector<16x32xf32>
    %cst_11 = arith.constant dense<0.000000e+00> : vector<16xf32>
    %16 = vector.multi_reduction <add>, %15, %cst_11 [1] : vector<16x32xf32> to vector<16xf32>
    %17 = vector.shape_cast %16 : vector<16xf32> to vector<16x1xf32>
    %cst_12 = arith.constant 0.0322580636 : f32
    %18 = vector.broadcast %cst_12 : f32 to vector<16x1xf32>
    %19 = arith.mulf %17, %18 : vector<16x1xf32>
    %20 = vector.broadcast %12 : vector<16x1xf32> to vector<16x32xf32>
    %21 = arith.subf %3, %20 : vector<16x32xf32>
    %cst_13 = arith.constant 9.99999974E-6 : f32
    %22 = vector.broadcast %cst_13 : f32 to vector<16x1xf32>
    %23 = arith.addf %19, %22 : vector<16x1xf32>
    %24 = math.rsqrt %23 : vector<16x1xf32>
    %25 = vector.broadcast %24 : vector<16x1xf32> to vector<16x32xf32>
    %26 = arith.mulf %21, %25 : vector<16x32xf32>
    %27 = vector.broadcast %6 : vector<1x32xf32> to vector<16x32xf32>
    %28 = arith.mulf %27, %26 : vector<16x32xf32>
    %29 = vector.broadcast %8 : vector<1x32xf32> to vector<16x32xf32>
    %30 = arith.addf %28, %29 : vector<16x32xf32>
    %31 = arith.truncf %30 : vector<16x32xf32> to vector<16x32xbf16>
    %c0_14 = arith.constant 0 : index
    %c0_15 = arith.constant 0 : index
    %c0_16 = arith.constant 0 : index
    %32 = vector.load %arg10[%c0_14, %c0_15, %c0_16] : memref<1x32x96xf32, #tpu.memory_space<vmem>>, vector<1x32x96xf32>
    %33 = vector.shape_cast %32 : vector<1x32x96xf32> to vector<32x96xf32>
    %34 = arith.truncf %33 : vector<32x96xf32> to vector<32x96xbf16>
    %cst_17 = arith.constant dense<0.000000e+00> : vector<16x96xf32>
    %35 = tpu.matmul %31, %34, %cst_17 {dimension_numbers = #tpu.dot_dimension_numbers<[1], [0], [0], [1], [0, 0, 1, 1], [], []>} : vector<16x32xbf16>, vector<32x96xbf16>, vector<16x96xf32> -> vector<16x96xf32>
    %36 = vector.extract_strided_slice %35 {offsets = [0, 0], sizes = [16, 32], strides = [1, 1]} : vector<16x96xf32> to vector<16x32xf32>
    %cst_18 = arith.constant 0.353553385 : f32
    %37 = vector.broadcast %cst_18 : f32 to vector<16x32xf32>
    %38 = arith.mulf %36, %37 : vector<16x32xf32>
    %39 = vector.extract_strided_slice %35 {offsets = [0, 32], sizes = [16, 32], strides = [1, 1]} : vector<16x96xf32> to vector<16x32xf32>
    %40 = vector.extract_strided_slice %35 {offsets = [0, 64], sizes = [16, 32], strides = [1, 1]} : vector<16x96xf32> to vector<16x32xf32>
    %41 = vector.shape_cast %38 : vector<16x32xf32> to vector<2x8x32xf32>
    %42 = vector.shape_cast %39 : vector<16x32xf32> to vector<2x8x32xf32>
    %43 = vector.shape_cast %40 : vector<16x32xf32> to vector<2x8x32xf32>
    %44 = tpu.concatenate %41, %41, %41, %41 in 1 : vector<2x8x32xf32>, vector<2x8x32xf32>, vector<2x8x32xf32>, vector<2x8x32xf32> -> vector<2x32x32xf32>
    %45 = vector.shape_cast %4 : vector<32x32xf32> to vector<1x32x32xf32>
    %46 = vector.broadcast %45 : vector<1x32x32xf32> to vector<2x32x32xf32>
    %47 = arith.mulf %44, %46 : vector<2x32x32xf32>
    %48 = arith.truncf %47 : vector<2x32x32xf32> to vector<2x32x32xbf16>
    %49 = arith.truncf %42 : vector<2x8x32xf32> to vector<2x8x32xbf16>
    "tpu.trace_start"() <{level = 10 : i32, message = "bqd,bkd->bqk"}> : () -> ()
    %cst_19 = arith.constant dense<0.000000e+00> : vector<2x32x8xf32>
    %50 = tpu.matmul %48, %49, %cst_19 {dimension_numbers = #tpu.dot_dimension_numbers<[2], [2], [1], [1], [0, 0, 0, 1, 1, 1], [0], [0]>} : vector<2x32x32xbf16>, vector<2x8x32xbf16>, vector<2x32x8xf32> -> vector<2x32x8xf32>
    "tpu.trace_stop"() : () -> ()
    %c0_20 = arith.constant 0 : index
    %c0_21 = arith.constant 0 : index
    %51 = vector.load %arg5[%c0_20, %c0_21] : memref<32x8xf32, #tpu.memory_space<vmem>>, vector<32x8xf32>
    %52 = vector.shape_cast %51 : vector<32x8xf32> to vector<1x32x8xf32>
    %53 = vector.broadcast %52 : vector<1x32x8xf32> to vector<2x32x8xf32>
    %54 = arith.addf %50, %53 : vector<2x32x8xf32>
    %cst_22 = arith.constant dense<0xFF800000> : vector<2x32xf32>
    %55 = vector.multi_reduction <maximumf>, %54, %cst_22 [2] : vector<2x32x8xf32> to vector<2x32xf32>
    %56 = vector.shape_cast %55 : vector<2x32xf32> to vector<2x32x1xf32>
    %57 = vector.broadcast %56 : vector<2x32x1xf32> to vector<2x32x8xf32>
    %58 = arith.subf %54, %57 : vector<2x32x8xf32>
    %59 = math.exp %58 : vector<2x32x8xf32>
    %cst_23 = arith.constant dense<0.000000e+00> : vector<2x32xf32>
    %60 = vector.multi_reduction <add>, %59, %cst_23 [2] : vector<2x32x8xf32> to vector<2x32xf32>
    %61 = vector.shape_cast %60 : vector<2x32xf32> to vector<2x32x1xf32>
    %62 = tpu.reciprocal %61 {approx = true} : vector<2x32x1xf32> -> vector<2x32x1xf32>
    %63 = vector.broadcast %62 : vector<2x32x1xf32> to vector<2x32x8xf32>
    %64 = arith.mulf %59, %63 : vector<2x32x8xf32>
    %65 = arith.truncf %64 : vector<2x32x8xf32> to vector<2x32x8xbf16>
    %66 = arith.truncf %43 : vector<2x8x32xf32> to vector<2x8x32xbf16>
    "tpu.trace_start"() <{level = 10 : i32, message = "bqk,bkd->bqd"}> : () -> ()
    %cst_24 = arith.constant dense<0.000000e+00> : vector<2x32x32xf32>
    %67 = tpu.matmul %65, %66, %cst_24 {dimension_numbers = #tpu.dot_dimension_numbers<[2], [1], [1], [2], [0, 0, 0, 1, 1, 2], [0], [0]>} : vector<2x32x8xbf16>, vector<2x8x32xbf16>, vector<2x32x32xf32> -> vector<2x32x32xf32>
    "tpu.trace_stop"() : () -> ()
    %68 = vector.shape_cast %4 : vector<32x32xf32> to vector<1x32x32xf32>
    %69 = vector.broadcast %68 : vector<1x32x32xf32> to vector<2x32x32xf32>
    %70 = arith.mulf %67, %69 : vector<2x32x32xf32>
    %71 = vector.extract_strided_slice %70 {offsets = [0, 0, 0], sizes = [2, 8, 32], strides = [1, 1, 1]} : vector<2x32x32xf32> to vector<2x8x32xf32>
    %72 = vector.extract_strided_slice %70 {offsets = [0, 8, 0], sizes = [2, 8, 32], strides = [1, 1, 1]} : vector<2x32x32xf32> to vector<2x8x32xf32>
    %73 = arith.addf %71, %72 : vector<2x8x32xf32>
    %74 = vector.extract_strided_slice %70 {offsets = [0, 16, 0], sizes = [2, 8, 32], strides = [1, 1, 1]} : vector<2x32x32xf32> to vector<2x8x32xf32>
    %75 = arith.addf %73, %74 : vector<2x8x32xf32>
    %76 = vector.extract_strided_slice %70 {offsets = [0, 24, 0], sizes = [2, 8, 32], strides = [1, 1, 1]} : vector<2x32x32xf32> to vector<2x8x32xf32>
    %77 = arith.addf %75, %76 : vector<2x8x32xf32>
    %78 = vector.shape_cast %77 : vector<2x8x32xf32> to vector<16x32xf32>
    %79 = arith.truncf %78 : vector<16x32xf32> to vector<16x32xbf16>
    %c0_25 = arith.constant 0 : index
    %c0_26 = arith.constant 0 : index
    %c0_27 = arith.constant 0 : index
    %80 = vector.load %arg11[%c0_25, %c0_26, %c0_27] : memref<1x32x32xf32, #tpu.memory_space<vmem>>, vector<1x32x32xf32>
    %81 = vector.shape_cast %80 : vector<1x32x32xf32> to vector<32x32xf32>
    %82 = arith.truncf %81 : vector<32x32xf32> to vector<32x32xbf16>
    %cst_28 = arith.constant dense<0.000000e+00> : vector<16x32xf32>
    %83 = tpu.matmul %79, %82, %cst_28 {dimension_numbers = #tpu.dot_dimension_numbers<[1], [0], [0], [1], [0, 0, 1, 1], [], []>} : vector<16x32xbf16>, vector<32x32xbf16>, vector<16x32xf32> -> vector<16x32xf32>
    %c0_29 = arith.constant 0 : index
    %c0_30 = arith.constant 0 : index
    %c0_31 = arith.constant 0 : index
    %84 = vector.load %arg12[%c0_29, %c0_30, %c0_31] : memref<1x1x32xf32, #tpu.memory_space<vmem>>, vector<1x1x32xf32>
    %85 = vector.shape_cast %84 : vector<1x1x32xf32> to vector<1x32xf32>
    %86 = vector.broadcast %85 : vector<1x32xf32> to vector<16x32xf32>
    %87 = arith.addf %83, %86 : vector<16x32xf32>
    %88 = arith.addf %3, %87 : vector<16x32xf32>
    %c0_32 = arith.constant 0 : index
    %c0_33 = arith.constant 0 : index
    %c0_34 = arith.constant 0 : index
    %89 = vector.load %arg8[%c0_32, %c0_33, %c0_34] : memref<1x1x32xf32, #tpu.memory_space<vmem>>, vector<1x1x32xf32>
    %90 = vector.shape_cast %89 : vector<1x1x32xf32> to vector<1x32xf32>
    %c0_35 = arith.constant 0 : index
    %c0_36 = arith.constant 0 : index
    %c0_37 = arith.constant 0 : index
    %91 = vector.load %arg9[%c0_35, %c0_36, %c0_37] : memref<1x1x32xf32, #tpu.memory_space<vmem>>, vector<1x1x32xf32>
    %92 = vector.shape_cast %91 : vector<1x1x32xf32> to vector<1x32xf32>
    %cst_38 = arith.constant dense<0.000000e+00> : vector<16xf32>
    %93 = vector.multi_reduction <add>, %88, %cst_38 [1] : vector<16x32xf32> to vector<16xf32>
    %94 = vector.shape_cast %93 : vector<16xf32> to vector<16x1xf32>
    %cst_39 = arith.constant 3.200000e+01 : f32
    %95 = vector.broadcast %cst_39 : f32 to vector<16x1xf32>
    %96 = arith.divf %94, %95 : vector<16x1xf32>
    %97 = vector.broadcast %96 : vector<16x1xf32> to vector<16x32xf32>
    %98 = arith.subf %88, %97 : vector<16x32xf32>
    %99 = arith.mulf %98, %98 : vector<16x32xf32>
    %cst_40 = arith.constant dense<0.000000e+00> : vector<16xf32>
    %100 = vector.multi_reduction <add>, %99, %cst_40 [1] : vector<16x32xf32> to vector<16xf32>
    %101 = vector.shape_cast %100 : vector<16xf32> to vector<16x1xf32>
    %cst_41 = arith.constant 0.0322580636 : f32
    %102 = vector.broadcast %cst_41 : f32 to vector<16x1xf32>
    %103 = arith.mulf %101, %102 : vector<16x1xf32>
    %104 = vector.broadcast %96 : vector<16x1xf32> to vector<16x32xf32>
    %105 = arith.subf %88, %104 : vector<16x32xf32>
    %cst_42 = arith.constant 9.99999974E-6 : f32
    %106 = vector.broadcast %cst_42 : f32 to vector<16x1xf32>
    %107 = arith.addf %103, %106 : vector<16x1xf32>
    %108 = math.rsqrt %107 : vector<16x1xf32>
    %109 = vector.broadcast %108 : vector<16x1xf32> to vector<16x32xf32>
    %110 = arith.mulf %105, %109 : vector<16x32xf32>
    %111 = vector.broadcast %90 : vector<1x32xf32> to vector<16x32xf32>
    %112 = arith.mulf %111, %110 : vector<16x32xf32>
    %113 = vector.broadcast %92 : vector<1x32xf32> to vector<16x32xf32>
    %114 = arith.addf %112, %113 : vector<16x32xf32>
    %115 = arith.truncf %114 : vector<16x32xf32> to vector<16x32xbf16>
    %c0_43 = arith.constant 0 : index
    %c0_44 = arith.constant 0 : index
    %c0_45 = arith.constant 0 : index
    %116 = vector.load %arg13[%c0_43, %c0_44, %c0_45] : memref<1x32x128xf32, #tpu.memory_space<vmem>>, vector<1x32x128xf32>
    %117 = vector.shape_cast %116 : vector<1x32x128xf32> to vector<32x128xf32>
    %118 = arith.truncf %117 : vector<32x128xf32> to vector<32x128xbf16>
    %cst_46 = arith.constant dense<0.000000e+00> : vector<16x128xf32>
    %119 = tpu.matmul %115, %118, %cst_46 {dimension_numbers = #tpu.dot_dimension_numbers<[1], [0], [0], [1], [0, 0, 1, 1], [], []>} : vector<16x32xbf16>, vector<32x128xbf16>, vector<16x128xf32> -> vector<16x128xf32>
    %c0_47 = arith.constant 0 : index
    %c0_48 = arith.constant 0 : index
    %c0_49 = arith.constant 0 : index
    %120 = vector.load %arg14[%c0_47, %c0_48, %c0_49] : memref<1x1x128xf32, #tpu.memory_space<vmem>>, vector<1x1x128xf32>
    %121 = vector.shape_cast %120 : vector<1x1x128xf32> to vector<1x128xf32>
    %122 = vector.broadcast %121 : vector<1x128xf32> to vector<16x128xf32>
    %123 = arith.addf %119, %122 : vector<16x128xf32>
    %cst_50 = arith.constant 5.000000e-01 : f32
    %124 = vector.broadcast %cst_50 : f32 to vector<16x128xf32>
    %125 = arith.mulf %124, %123 : vector<16x128xf32>
    %cst_51 = arith.constant 4.471500e-02 : f32
    %126 = vector.broadcast %cst_51 : f32 to vector<16x128xf32>
    %127 = arith.mulf %126, %123 : vector<16x128xf32>
    %128 = arith.mulf %127, %123 : vector<16x128xf32>
    %129 = arith.mulf %128, %123 : vector<16x128xf32>
    %130 = arith.addf %123, %129 : vector<16x128xf32>
    %cst_52 = arith.constant 0.797884583 : f32
    %131 = vector.broadcast %cst_52 : f32 to vector<16x128xf32>
    %132 = arith.mulf %131, %130 : vector<16x128xf32>
    %133 = math.tanh %132 : vector<16x128xf32>
    %cst_53 = arith.constant 1.000000e+00 : f32
    %134 = vector.broadcast %cst_53 : f32 to vector<16x128xf32>
    %135 = arith.addf %134, %133 : vector<16x128xf32>
    %136 = arith.mulf %125, %135 : vector<16x128xf32>
    %137 = arith.truncf %136 : vector<16x128xf32> to vector<16x128xbf16>
    %c0_54 = arith.constant 0 : index
    %c0_55 = arith.constant 0 : index
    %c0_56 = arith.constant 0 : index
    %138 = vector.load %arg15[%c0_54, %c0_55, %c0_56] : memref<1x128x32xf32, #tpu.memory_space<vmem>>, vector<1x128x32xf32>
    %139 = vector.shape_cast %138 : vector<1x128x32xf32> to vector<128x32xf32>
    %140 = arith.truncf %139 : vector<128x32xf32> to vector<128x32xbf16>
    %cst_57 = arith.constant dense<0.000000e+00> : vector<16x32xf32>
    %141 = tpu.matmul %137, %140, %cst_57 {dimension_numbers = #tpu.dot_dimension_numbers<[1], [0], [0], [1], [0, 0, 1, 1], [], []>} : vector<16x128xbf16>, vector<128x32xbf16>, vector<16x32xf32> -> vector<16x32xf32>
    %c0_58 = arith.constant 0 : index
    %c0_59 = arith.constant 0 : index
    %c0_60 = arith.constant 0 : index
    %142 = vector.load %arg16[%c0_58, %c0_59, %c0_60] : memref<1x1x32xf32, #tpu.memory_space<vmem>>, vector<1x1x32xf32>
    %143 = vector.shape_cast %142 : vector<1x1x32xf32> to vector<1x32xf32>
    %144 = vector.broadcast %143 : vector<1x32xf32> to vector<16x32xf32>
    %145 = arith.addf %141, %144 : vector<16x32xf32>
    %146 = arith.addf %88, %145 : vector<16x32xf32>
    %c0_61 = arith.constant 0 : index
    %c0_62 = arith.constant 0 : index
    %147 = vector.load %arg21[%c0_61, %c0_62] : memref<16x32xf32, #tpu.memory_space<vmem>>, vector<16x32xf32>
    tpu.vector_store %arg21[%c0_61, %c0_62], %146 {strides = array<i32>} : memref<16x32xf32, #tpu.memory_space<vmem>>, vector<16x32xf32>,
    %c1_i32 = arith.constant 1 : i32
    %148 = arith.cmpi eq, %arg0, %c1_i32 : i32
    %149 = arith.extui %148 : i1 to i32
    %c0_i32_63 = arith.constant 0 : i32
    %150 = arith.cmpi ne, %149, %c0_i32_63 : i32
    scf.if %150 {
      %c0_64 = arith.constant 0 : index
      %c0_65 = arith.constant 0 : index
      %151 = vector.load %arg17[%c0_64, %c0_65] : memref<1x32xf32, #tpu.memory_space<vmem>>, vector<1x32xf32>
      %c0_66 = arith.constant 0 : index
      %c0_67 = arith.constant 0 : index
      %152 = vector.load %arg18[%c0_66, %c0_67] : memref<1x32xf32, #tpu.memory_space<vmem>>, vector<1x32xf32>
      %cst_68 = arith.constant dense<0.000000e+00> : vector<16xf32>
      %153 = vector.multi_reduction <add>, %146, %cst_68 [1] : vector<16x32xf32> to vector<16xf32>
      %154 = vector.shape_cast %153 : vector<16xf32> to vector<16x1xf32>
      %cst_69 = arith.constant 3.200000e+01 : f32
      %155 = vector.broadcast %cst_69 : f32 to vector<16x1xf32>
      %156 = arith.divf %154, %155 : vector<16x1xf32>
      %157 = vector.broadcast %156 : vector<16x1xf32> to vector<16x32xf32>
      %158 = arith.subf %146, %157 : vector<16x32xf32>
      %159 = arith.mulf %158, %158 : vector<16x32xf32>
      %cst_70 = arith.constant dense<0.000000e+00> : vector<16xf32>
      %160 = vector.multi_reduction <add>, %159, %cst_70 [1] : vector<16x32xf32> to vector<16xf32>
      %161 = vector.shape_cast %160 : vector<16xf32> to vector<16x1xf32>
      %cst_71 = arith.constant 0.0322580636 : f32
      %162 = vector.broadcast %cst_71 : f32 to vector<16x1xf32>
      %163 = arith.mulf %161, %162 : vector<16x1xf32>
      %164 = vector.broadcast %156 : vector<16x1xf32> to vector<16x32xf32>
      %165 = arith.subf %146, %164 : vector<16x32xf32>
      %cst_72 = arith.constant 9.99999974E-6 : f32
      %166 = vector.broadcast %cst_72 : f32 to vector<16x1xf32>
      %167 = arith.addf %163, %166 : vector<16x1xf32>
      %168 = math.rsqrt %167 : vector<16x1xf32>
      %169 = vector.broadcast %168 : vector<16x1xf32> to vector<16x32xf32>
      %170 = arith.mulf %165, %169 : vector<16x32xf32>
      %171 = vector.broadcast %151 : vector<1x32xf32> to vector<16x32xf32>
      %172 = arith.mulf %171, %170 : vector<16x32xf32>
      %173 = vector.broadcast %152 : vector<1x32xf32> to vector<16x32xf32>
      %174 = arith.addf %172, %173 : vector<16x32xf32>
      %175 = arith.truncf %174 : vector<16x32xf32> to vector<16x32xbf16>
      %c0_73 = arith.constant 0 : index
      %c0_74 = arith.constant 0 : index
      %176 = vector.load %arg19[%c0_73, %c0_74] : memref<32x128xf32, #tpu.memory_space<vmem>>, vector<32x128xf32>
      %177 = arith.truncf %176 : vector<32x128xf32> to vector<32x128xbf16>
      %cst_75 = arith.constant dense<0.000000e+00> : vector<16x128xf32>
      %178 = tpu.matmul %175, %177, %cst_75 {dimension_numbers = #tpu.dot_dimension_numbers<[1], [0], [0], [1], [0, 0, 1, 1], [], []>} : vector<16x32xbf16>, vector<32x128xbf16>, vector<16x128xf32> -> vector<16x128xf32>
      %c0_76 = arith.constant 0 : index
      %c0_77 = arith.constant 0 : index
      %179 = vector.load %arg20[%c0_76, %c0_77] : memref<16x128xf32, #tpu.memory_space<vmem>>, vector<16x128xf32>
      tpu.vector_store %arg20[%c0_76, %c0_77], %178 {strides = array<i32>} : memref<16x128xf32, #tpu.memory_space<vmem>>, vector<16x128xf32>,
    } else {
    }
    return
  }
  func.func @transform_0(%arg0: i32) -> (i32, i32) {
    %c0_i32 = arith.constant 0 : i32
    %c0_i32_0 = arith.constant 0 : i32
    %c0_i32_1 = arith.constant 0 : i32
    return %c0_i32, %c0_i32_0 : i32, i32
  }
  func.func @transform_1(%arg0: i32) -> (i32, i32) {
    %c0_i32 = arith.constant 0 : i32
    %c0_i32_0 = arith.constant 0 : i32
    %c0_i32_1 = arith.constant 0 : i32
    return %c0_i32, %c0_i32_0 : i32, i32
  }
  func.func @transform_2(%arg0: i32) -> (i32, i32) {
    %c0_i32 = arith.constant 0 : i32
    %c0_i32_0 = arith.constant 0 : i32
    %c0_i32_1 = arith.constant 0 : i32
    return %c0_i32, %c0_i32_0 : i32, i32
  }
  func.func @transform_3(%arg0: i32) -> (i32, i32) {
    %c0_i32 = arith.constant 0 : i32
    %c0_i32_0 = arith.constant 0 : i32
    %c0_i32_1 = arith.constant 0 : i32
    return %c0_i32, %c0_i32_0 : i32, i32
  }
  func.func @transform_4(%arg0: i32) -> (i32, i32) {
    %c0_i32 = arith.constant 0 : i32
    %c0_i32_0 = arith.constant 0 : i32
    %c0_i32_1 = arith.constant 0 : i32
    return %c0_i32, %c0_i32_0 : i32, i32
  }
  func.func @transform_5(%arg0: i32) -> (i32, i32, i32) {
    %c0_i32 = arith.constant 0 : i32
    %c0_i32_0 = arith.constant 0 : i32
    %c0_i32_1 = arith.constant 0 : i32
    return %arg0, %c0_i32, %c0_i32_0 : i32, i32, i32
  }
  func.func @transform_6(%arg0: i32) -> (i32, i32, i32) {
    %c0_i32 = arith.constant 0 : i32
    %c0_i32_0 = arith.constant 0 : i32
    %c0_i32_1 = arith.constant 0 : i32
    return %arg0, %c0_i32, %c0_i32_0 : i32, i32, i32
  }
  func.func @transform_7(%arg0: i32) -> (i32, i32, i32) {
    %c0_i32 = arith.constant 0 : i32
    %c0_i32_0 = arith.constant 0 : i32
    %c0_i32_1 = arith.constant 0 : i32
    return %arg0, %c0_i32, %c0_i32_0 : i32, i32, i32
  }
  func.func @transform_8(%arg0: i32) -> (i32, i32, i32) {
    %c0_i32 = arith.constant 0 : i32
    %c0_i32_0 = arith.constant 0 : i32
    %c0_i32_1 = arith.constant 0 : i32
    return %arg0, %c0_i32, %c0_i32_0 : i32, i32, i32
  }
  func.func @transform_9(%arg0: i32) -> (i32, i32, i32) {
    %c0_i32 = arith.constant 0 : i32
    %c0_i32_0 = arith.constant 0 : i32
    %c0_i32_1 = arith.constant 0 : i32
    return %arg0, %c0_i32, %c0_i32_0 : i32, i32, i32
  }
  func.func @transform_10(%arg0: i32) -> (i32, i32, i32) {
    %c0_i32 = arith.constant 0 : i32
    %c0_i32_0 = arith.constant 0 : i32
    %c0_i32_1 = arith.constant 0 : i32
    return %arg0, %c0_i32, %c0_i32_0 : i32, i32, i32
  }
  func.func @transform_11(%arg0: i32) -> (i32, i32, i32) {
    %c0_i32 = arith.constant 0 : i32
    %c0_i32_0 = arith.constant 0 : i32
    %c0_i32_1 = arith.constant 0 : i32
    return %arg0, %c0_i32, %c0_i32_0 : i32, i32, i32
  }
  func.func @transform_12(%arg0: i32) -> (i32, i32, i32) {
    %c0_i32 = arith.constant 0 : i32
    %c0_i32_0 = arith.constant 0 : i32
    %c0_i32_1 = arith.constant 0 : i32
    return %arg0, %c0_i32, %c0_i32_0 : i32, i32, i32
  }
  func.func @transform_13(%arg0: i32) -> (i32, i32, i32) {
    %c0_i32 = arith.constant 0 : i32
    %c0_i32_0 = arith.constant 0 : i32
    %c0_i32_1 = arith.constant 0 : i32
    return %arg0, %c0_i32, %c0_i32_0 : i32, i32, i32
  }
  func.func @transform_14(%arg0: i32) -> (i32, i32, i32) {
    %c0_i32 = arith.constant 0 : i32
    %c0_i32_0 = arith.constant 0 : i32
    %c0_i32_1 = arith.constant 0 : i32
    return %arg0, %c0_i32, %c0_i32_0 : i32, i32, i32
  }
  func.func @transform_15(%arg0: i32) -> (i32, i32, i32) {
    %c0_i32 = arith.constant 0 : i32
    %c0_i32_0 = arith.constant 0 : i32
    %c0_i32_1 = arith.constant 0 : i32
    return %arg0, %c0_i32, %c0_i32_0 : i32, i32, i32
  }
  func.func @transform_16(%arg0: i32) -> (i32, i32) {
    %c0_i32 = arith.constant 0 : i32
    %c0_i32_0 = arith.constant 0 : i32
    %c0_i32_1 = arith.constant 0 : i32
    return %c0_i32, %c0_i32_0 : i32, i32
  }
  func.func @transform_17(%arg0: i32) -> (i32, i32) {
    %c0_i32 = arith.constant 0 : i32
    %c0_i32_0 = arith.constant 0 : i32
    %c0_i32_1 = arith.constant 0 : i32
    return %c0_i32, %c0_i32_0 : i32, i32
  }
  func.func @transform_18(%arg0: i32) -> (i32, i32) {
    %c0_i32 = arith.constant 0 : i32
    %c0_i32_0 = arith.constant 0 : i32
    %c0_i32_1 = arith.constant 0 : i32
    return %c0_i32, %c0_i32_0 : i32, i32
  }
  func.func @transform_19(%arg0: i32) -> (i32, i32) {
    %c0_i32 = arith.constant 0 : i32
    %c0_i32_0 = arith.constant 0 : i32
    %c0_i32_1 = arith.constant 0 : i32
    return %c0_i32, %c0_i32_0 : i32, i32
  }
}

</mosaic_0001>

<llo_original>
// kernel: gt.11
$region0: #{gt.11}
  %s0 = inlined_call_operand.vmem [shape: s32[4,8], index: 0, kind: input, shape index: {}]
  %s1 = inlined_call_operand.vmem [shape: s32[32], index: 1, kind: output, shape index: {}]
  $region1: #{gt.11} parent=0
    #allocation0 [shape = 'u8[4096]{0}', space=vmem, size = 0x1000, scoped, tag = 'scoped mem for output reshape']
    #allocation1 [shape = 'u8[4096]{0}', space=vmem, size = 0x1000, scoped, tag = 'scoped mem for input reshape']
    %s3 = sshllo.u32 0, 4
    %v4 = vld [vmem:[%s0] sm:%s3]
    %5 = vst [vmem:[#allocation1] sm:%s3] %v4
    %v6 = vld [vmem:[#allocation1] sm:$0x1]
    %vm7 = vcmask 64512
    %8 = vst.msk [vmem:[#allocation0] sm:$0x1] %vm7, %v6
    %s9 = scalar_lea.vmem [#allocation1], 3
    %v10 = vld [vmem:[%s9] sm:$0x1]
    %11 = vrot.lane.b32.xlu0 %v10, 24
    %v12 = vpop.permute.xlu0 %11
    %vm13 = vcmask 261312
    %14 = vst.msk [vmem:[#allocation0] sm:$0x1] %vm13, %v12
    %s15 = scalar_lea.vmem [#allocation1], 2
    %v16 = vld [vmem:[%s15] sm:$0x1]
    %17 = vrot.lane.b32.xlu0 %v16, 16
    %v18 = vpop.permute.xlu0 %17
    %vm19 = vcmask 195712
    %20 = vst.msk [vmem:[#allocation0] sm:$0x1] %vm19, %v18
    %s21 = scalar_lea.vmem [#allocation1], 1
    %v22 = vld [vmem:[%s21] sm:$0x1]
    %23 = vrot.lane.b32.xlu0 %v22, 8
    %v24 = vpop.permute.xlu0 %23
    %vm25 = vcmask 130112
    %26 = vst.msk [vmem:[#allocation0] sm:$0x1] %vm25, %v24
    %s28 = sshllo.u32 0, 1
    %v30 = vld [vmem:[#allocation0] sm:%s28]
    %s31 = sshllo.u32 0, 1
    %32 = vst [vmem:[%s1] sm:%s31] %v30

// kernel: gpt_forward.1
$region0: #{gpt_forward.1}
  #allocation0 [shape = 'u32[]', space=smem, size = 0x4, offset = 0x4, fixed_abs, tag = 'smem constant byte address 0x4 - core index']
  #allocation1 [shape = 'u32[144,128]{1,0:T(1,128)}', space=vmem, size = 0x12000, scoped, tag = 'internal scratch']
  #allocation2 [shape = 'f32[16,32]{1,0:T(8,128)}', space=vmem, size = 0x2000, scoped, tag = 'scratch operand']
  %s0 = inlined_call_operand.vmem [shape: s32[16,1], index: 0, kind: input, shape index: {}]
  %s1 = inlined_call_operand.vmem [shape: f32[16,32], index: 1, kind: input, shape index: {}]
  %s2 = inlined_call_operand.vmem [shape: f32[64,32], index: 2, kind: input, shape index: {}]
  %s3 = inlined_call_operand.vmem [shape: f32[32,32], index: 3, kind: input, shape index: {}]
  %s4 = inlined_call_operand.vmem [shape: f32[32,8], index: 4, kind: input, shape index: {}]
  %s5 = inlined_call_operand.vmem [shape: f32[2,1,32], index: 5, kind: input, shape index: {}]
  %s6 = inlined_call_operand.vmem [shape: f32[2,1,32], index: 6, kind: input, shape index: {}]
  %s7 = inlined_call_operand.vmem [shape: f32[2,1,32], index: 7, kind: input, shape index: {}]
  %s8 = inlined_call_operand.vmem [shape: f32[2,1,32], index: 8, kind: input, shape index: {}]
  %s9 = inlined_call_operand.vmem [shape: f32[2,32,96], index: 9, kind: input, shape index: {}]
  %s10 = inlined_call_operand.vmem [shape: f32[2,32,32], index: 10, kind: input, shape index: {}]
  %s11 = inlined_call_operand.vmem [shape: f32[2,1,32], index: 11, kind: input, shape index: {}]
  %s12 = inlined_call_operand.vmem [shape: f32[2,32,128], index: 12, kind: input, shape index: {}]
  %s13 = inlined_call_operand.vmem [shape: f32[2,1,128], index: 13, kind: input, shape index: {}]
  %s14 = inlined_call_operand.vmem [shape: f32[2,128,32], index: 14, kind: input, shape index: {}]
  %s15 = inlined_call_operand.vmem [shape: f32[2,1,32], index: 15, kind: input, shape index: {}]
  %s16 = inlined_call_operand.vmem [shape: f32[1,32], index: 16, kind: input, shape index: {}]
  %s17 = inlined_call_operand.vmem [shape: f32[1,32], index: 17, kind: input, shape index: {}]
  %s18 = inlined_call_operand.vmem [shape: f32[32,128], index: 18, kind: input, shape index: {}]
  %s19 = inlined_call_operand.vmem [shape: f32[16,128], index: 19, kind: output, shape index: {}]
  %s20 = sld [smem:[#allocation0]]
  $region117: #{gpt_forward.1} parent=0
    _
  %s22 = ssub.s32 1, %s20
  %s23 = scalar_select 0, %s22, %s20
  loop: start=0, step=1, limit=4
  $region2: #{gpt_forward.1} parent=0 // loop_pre_header
    _
  $region3: #{gpt_forward.1} parent=0 // loop_header
    %s25 = sphi 0, %s29
    %p26 = scmp.ge.s32.totalorder %s25, 4
    %s33 = sphi 0, %s33
    %s35 = sphi 0, %s33
    %s36 = sphi 0, %s35
    %s50 = sphi 0, %s36
    %s54 = sphi 0, %s54
    %s56 = sphi 0, %s54
    %s57 = sphi 0, %s56
    %s71 = sphi 0, %s57
    %s75 = sphi 0, %s75
    %s77 = sphi 0, %s75
    %s78 = sphi 0, %s77
    %s92 = sphi 0, %s78
    %s96 = sphi 0, %s96
    %s98 = sphi 0, %s96
    %s99 = sphi 0, %s98
    %s113 = sphi 0, %s99
    %s117 = sphi 0, %s117
    %s119 = sphi 0, %s117
    %s120 = sphi 0, %s119
    %s134 = sphi 0, %s120
    %s140 = sphi 0, %s142
    %s143 = sphi 0, %s140
    %s144 = sphi 0, %s143
    %s160 = sphi 0, %s144
    %s166 = sphi 0, %s168
    %s169 = sphi 0, %s166
    %s170 = sphi 0, %s169
    %s186 = sphi 0, %s170
    %s192 = sphi 0, %s194
    %s195 = sphi 0, %s192
    %s196 = sphi 0, %s195
    %s212 = sphi 0, %s196
    %s218 = sphi 0, %s220
    %s221 = sphi 0, %s218
    %s222 = sphi 0, %s221
    %s238 = sphi 0, %s222
    %s244 = sphi 0, %s246
    %s247 = sphi 0, %s244
    %s248 = sphi 0, %s247
    %s264 = sphi 0, %s248
    %s270 = sphi 0, %s272
    %s273 = sphi 0, %s270
    %s274 = sphi 0, %s273
    %s290 = sphi 0, %s274
    %s296 = sphi 0, %s298
    %s299 = sphi 0, %s296
    %s300 = sphi 0, %s299
    %s316 = sphi 0, %s300
    %s322 = sphi 0, %s324
    %s325 = sphi 0, %s322
    %s326 = sphi 0, %s325
    %s342 = sphi 0, %s326
    %s348 = sphi 0, %s350
    %s351 = sphi 0, %s348
    %s352 = sphi 0, %s351
    %s368 = sphi 0, %s352
    %s374 = sphi 0, %s376
    %s377 = sphi 0, %s374
    %s378 = sphi 0, %s377
    %s394 = sphi 0, %s378
    %s400 = sphi 0, %s402
    %s403 = sphi 0, %s400
    %s404 = sphi 0, %s403
    %s420 = sphi 0, %s404
    %s424 = sphi 0, %s424
    %s426 = sphi 0, %s424
    %s427 = sphi 0, %s426
    %s441 = sphi 0, %s427
    %s445 = sphi 0, %s445
    %s447 = sphi 0, %s445
    %s448 = sphi 0, %s447
    %s462 = sphi 0, %s448
    %s466 = sphi 0, %s466
    %s468 = sphi 0, %s466
    %s469 = sphi 0, %s468
    %s483 = sphi 0, %s469
    %s487 = sphi 0, %s487
    %s489 = sphi 0, %s487
    %s490 = sphi 0, %s489
    %s504 = sphi 0, %s490
  $region4: #{gpt_forward.1} parent=0 // loop_header_branch
    %28 = sbr.rel (%p26) target = $region8
  $region5: #{gpt_forward.1} parent=0 // loop_body
    %s30 = ssub.s32 %s25, 1
    %s31 = ssub.s32 %s25, 2
    %s32 = sadd.s32 %s25, 1
    %s34 = sadd.s32 %s33, 1
    %p37 = scmp.eq.s32.totalorder %s25, 1
    %p38 = scmp.ne.s32.totalorder %s33, %s35
    %p39 = scmp.eq.s32.totalorder %s25, 0
    %p40 = por %p38, %p39
    %p41 = scmp.ne.s32.totalorder %s33, %s35
    %p42 = scmp.eq.s32.totalorder %s30, 1
    %p43 = por %p41, %p42
    %p44 = scmp.ne.s32.totalorder %s35, %s36
    %p45 = scmp.eq.s32.totalorder %s30, 0
    %p46 = por %p44, %p45
    %p47 = scmp.ne.s32.totalorder %s35, %s36
    %p48 = scmp.eq.s32.totalorder %s31, 1
    %p49 = por %p47, %p48
    %p51 = scmp.ne.s32.totalorder %s36, %s50
    %p52 = scmp.eq.s32.totalorder %s31, 0
    %p53 = por %p51, %p52
    %s55 = sadd.s32 %s54, 1
    %p58 = scmp.eq.s32.totalorder %s25, 1
    %p59 = scmp.ne.s32.totalorder %s54, %s56
    %p60 = scmp.eq.s32.totalorder %s25, 0
    %p61 = por %p59, %p60
    %p62 = scmp.ne.s32.totalorder %s54, %s56
    %p63 = scmp.eq.s32.totalorder %s30, 1
    %p64 = por %p62, %p63
    %p65 = scmp.ne.s32.totalorder %s56, %s57
    %p66 = scmp.eq.s32.totalorder %s30, 0
    %p67 = por %p65, %p66
    %p68 = scmp.ne.s32.totalorder %s56, %s57
    %p69 = scmp.eq.s32.totalorder %s31, 1
    %p70 = por %p68, %p69
    %p72 = scmp.ne.s32.totalorder %s57, %s71
    %p73 = scmp.eq.s32.totalorder %s31, 0
    %p74 = por %p72, %p73
    %s76 = sadd.s32 %s75, 1
    %p79 = scmp.eq.s32.totalorder %s25, 1
    %p80 = scmp.ne.s32.totalorder %s75, %s77
    %p81 = scmp.eq.s32.totalorder %s25, 0
    %p82 = por %p80, %p81
    %p83 = scmp.ne.s32.totalorder %s75, %s77
    %p84 = scmp.eq.s32.totalorder %s30, 1
    %p85 = por %p83, %p84
    %p86 = scmp.ne.s32.totalorder %s77, %s78
    %p87 = scmp.eq.s32.totalorder %s30, 0
    %p88 = por %p86, %p87
    %p89 = scmp.ne.s32.totalorder %s77, %s78
    %p90 = scmp.eq.s32.totalorder %s31, 1
    %p91 = por %p89, %p90
    %p93 = scmp.ne.s32.totalorder %s78, %s92
    %p94 = scmp.eq.s32.totalorder %s31, 0
    %p95 = por %p93, %p94
    %s97 = sadd.s32 %s96, 1
    %p100 = scmp.eq.s32.totalorder %s25, 1
    %p101 = scmp.ne.s32.totalorder %s96, %s98
    %p102 = scmp.eq.s32.totalorder %s25, 0
    %p103 = por %p101, %p102
    %p104 = scmp.ne.s32.totalorder %s96, %s98
    %p105 = scmp.eq.s32.totalorder %s30, 1
    %p106 = por %p104, %p105
    %p107 = scmp.ne.s32.totalorder %s98, %s99
    %p108 = scmp.eq.s32.totalorder %s30, 0
    %p109 = por %p107, %p108
    %p110 = scmp.ne.s32.totalorder %s98, %s99
    %p111 = scmp.eq.s32.totalorder %s31, 1
    %p112 = por %p110, %p111
    %p114 = scmp.ne.s32.totalorder %s99, %s113
    %p115 = scmp.eq.s32.totalorder %s31, 0
    %p116 = por %p114, %p115
    %s118 = sadd.s32 %s117, 1
    %p121 = scmp.eq.s32.totalorder %s25, 1
    %p122 = scmp.ne.s32.totalorder %s117, %s119
    %p123 = scmp.eq.s32.totalorder %s25, 0
    %p124 = por %p122, %p123
    %p125 = scmp.ne.s32.totalorder %s117, %s119
    %p126 = scmp.eq.s32.totalorder %s30, 1
    %p127 = por %p125, %p126
    %p128 = scmp.ne.s32.totalorder %s119, %s120
    %p129 = scmp.eq.s32.totalorder %s30, 0
    %p130 = por %p128, %p129
    %p131 = scmp.ne.s32.totalorder %s119, %s120
    %p132 = scmp.eq.s32.totalorder %s31, 1
    %p133 = por %p131, %p132
    %p135 = scmp.ne.s32.totalorder %s120, %s134
    %p136 = scmp.eq.s32.totalorder %s31, 0
    %p137 = por %p135, %p136
    %s138 = ssub.s32 %s25, %s32
    %p139 = scmp.eq.s32.totalorder %s138, 0
    %s141 = sadd.s32 %s140, 1
    %s142 = scalar_select %p139, %s140, %s141
    %p145 = pneg %p139
    %p146 = scmp.eq.s32.totalorder %s25, 1
    %p147 = por %p145, %p146
    %p148 = scmp.ne.s32.totalorder %s140, %s143
    %p149 = scmp.eq.s32.totalorder %s25, 0
    %p150 = por %p148, %p149
    %p151 = scmp.ne.s32.totalorder %s140, %s143
    %p152 = scmp.eq.s32.totalorder %s30, 1
    %p153 = por %p151, %p152
    %p154 = scmp.ne.s32.totalorder %s143, %s144
    %p155 = scmp.eq.s32.totalorder %s30, 0
    %p156 = por %p154, %p155
    %p157 = scmp.ne.s32.totalorder %s143, %s144
    %p158 = scmp.eq.s32.totalorder %s31, 1
    %p159 = por %p157, %p158
    %p161 = scmp.ne.s32.totalorder %s144, %s160
    %p162 = scmp.eq.s32.totalorder %s31, 0
    %p163 = por %p161, %p162
    %s164 = ssub.s32 %s25, %s32
    %p165 = scmp.eq.s32.totalorder %s164, 0
    %s167 = sadd.s32 %s166, 1
    %s168 = scalar_select %p165, %s166, %s167
    %p171 = pneg %p165
    %p172 = scmp.eq.s32.totalorder %s25, 1
    %p173 = por %p171, %p172
    %p174 = scmp.ne.s32.totalorder %s166, %s169
    %p175 = scmp.eq.s32.totalorder %s25, 0
    %p176 = por %p174, %p175
    %p177 = scmp.ne.s32.totalorder %s166, %s169
    %p178 = scmp.eq.s32.totalorder %s30, 1
    %p179 = por %p177, %p178
    %p180 = scmp.ne.s32.totalorder %s169, %s170
    %p181 = scmp.eq.s32.totalorder %s30, 0
    %p182 = por %p180, %p181
    %p183 = scmp.ne.s32.totalorder %s169, %s170
    %p184 = scmp.eq.s32.totalorder %s31, 1
    %p185 = por %p183, %p184
    %p187 = scmp.ne.s32.totalorder %s170, %s186
    %p188 = scmp.eq.s32.totalorder %s31, 0
    %p189 = por %p187, %p188
    %s190 = ssub.s32 %s25, %s32
    %p191 = scmp.eq.s32.totalorder %s190, 0
    %s193 = sadd.s32 %s192, 1
    %s194 = scalar_select %p191, %s192, %s193
    %p197 = pneg %p191
    %p198 = scmp.eq.s32.totalorder %s25, 1
    %p199 = por %p197, %p198
    %p200 = scmp.ne.s32.totalorder %s192, %s195
    %p201 = scmp.eq.s32.totalorder %s25, 0
    %p202 = por %p200, %p201
    %p203 = scmp.ne.s32.totalorder %s192, %s195
    %p204 = scmp.eq.s32.totalorder %s30, 1
    %p205 = por %p203, %p204
    %p206 = scmp.ne.s32.totalorder %s195, %s196
    %p207 = scmp.eq.s32.totalorder %s30, 0
    %p208 = por %p206, %p207
    %p209 = scmp.ne.s32.totalorder %s195, %s196
    %p210 = scmp.eq.s32.totalorder %s31, 1
    %p211 = por %p209, %p210
    %p213 = scmp.ne.s32.totalorder %s196, %s212
    %p214 = scmp.eq.s32.totalorder %s31, 0
    %p215 = por %p213, %p214
    %s216 = ssub.s32 %s25, %s32
    %p217 = scmp.eq.s32.totalorder %s216, 0
    %s219 = sadd.s32 %s218, 1
    %s220 = scalar_select %p217, %s218, %s219
    %p223 = pneg %p217
    %p224 = scmp.eq.s32.totalorder %s25, 1
    %p225 = por %p223, %p224
    %p226 = scmp.ne.s32.totalorder %s218, %s221
    %p227 = scmp.eq.s32.totalorder %s25, 0
    %p228 = por %p226, %p227
    %p229 = scmp.ne.s32.totalorder %s218, %s221
    %p230 = scmp.eq.s32.totalorder %s30, 1
    %p231 = por %p229, %p230
    %p232 = scmp.ne.s32.totalorder %s221, %s222
    %p233 = scmp.eq.s32.totalorder %s30, 0
    %p234 = por %p232, %p233
    %p235 = scmp.ne.s32.totalorder %s221, %s222
    %p236 = scmp.eq.s32.totalorder %s31, 1
    %p237 = por %p235, %p236
    %p239 = scmp.ne.s32.totalorder %s222, %s238
    %p240 = scmp.eq.s32.totalorder %s31, 0
    %p241 = por %p239, %p240
    %s242 = ssub.s32 %s25, %s32
    %p243 = scmp.eq.s32.totalorder %s242, 0
    %s245 = sadd.s32 %s244, 1
    %s246 = scalar_select %p243, %s244, %s245
    %p249 = pneg %p243
    %p250 = scmp.eq.s32.totalorder %s25, 1
    %p251 = por %p249, %p250
    %p252 = scmp.ne.s32.totalorder %s244, %s247
    %p253 = scmp.eq.s32.totalorder %s25, 0
    %p254 = por %p252, %p253
    %p255 = scmp.ne.s32.totalorder %s244, %s247
    %p256 = scmp.eq.s32.totalorder %s30, 1
    %p257 = por %p255, %p256
    %p258 = scmp.ne.s32.totalorder %s247, %s248
    %p259 = scmp.eq.s32.totalorder %s30, 0
    %p260 = por %p258, %p259
    %p261 = scmp.ne.s32.totalorder %s247, %s248
    %p262 = scmp.eq.s32.totalorder %s31, 1
    %p263 = por %p261, %p262
    %p265 = scmp.ne.s32.totalorder %s248, %s264
    %p266 = scmp.eq.s32.totalorder %s31, 0
    %p267 = por %p265, %p266
    %s268 = ssub.s32 %s25, %s32
    %p269 = scmp.eq.s32.totalorder %s268, 0
    %s271 = sadd.s32 %s270, 1
    %s272 = scalar_select %p269, %s270, %s271
    %p275 = pneg %p269
    %p276 = scmp.eq.s32.totalorder %s25, 1
    %p277 = por %p275, %p276
    %p278 = scmp.ne.s32.totalorder %s270, %s273
    %p279 = scmp.eq.s32.totalorder %s25, 0
    %p280 = por %p278, %p279
    %p281 = scmp.ne.s32.totalorder %s270, %s273
    %p282 = scmp.eq.s32.totalorder %s30, 1
    %p283 = por %p281, %p282
    %p284 = scmp.ne.s32.totalorder %s273, %s274
    %p285 = scmp.eq.s32.totalorder %s30, 0
    %p286 = por %p284, %p285
    %p287 = scmp.ne.s32.totalorder %s273, %s274
    %p288 = scmp.eq.s32.totalorder %s31, 1
    %p289 = por %p287, %p288
    %p291 = scmp.ne.s32.totalorder %s274, %s290
    %p292 = scmp.eq.s32.totalorder %s31, 0
    %p293 = por %p291, %p292
    %s294 = ssub.s32 %s25, %s32
    %p295 = scmp.eq.s32.totalorder %s294, 0
    %s297 = sadd.s32 %s296, 1
    %s298 = scalar_select %p295, %s296, %s297
    %p301 = pneg %p295
    %p302 = scmp.eq.s32.totalorder %s25, 1
    %p303 = por %p301, %p302
    %p304 = scmp.ne.s32.totalorder %s296, %s299
    %p305 = scmp.eq.s32.totalorder %s25, 0
    %p306 = por %p304, %p305
    %p307 = scmp.ne.s32.totalorder %s296, %s299
    %p308 = scmp.eq.s32.totalorder %s30, 1
    %p309 = por %p307, %p308
    %p310 = scmp.ne.s32.totalorder %s299, %s300
    %p311 = scmp.eq.s32.totalorder %s30, 0
    %p312 = por %p310, %p311
    %p313 = scmp.ne.s32.totalorder %s299, %s300
    %p314 = scmp.eq.s32.totalorder %s31, 1
    %p315 = por %p313, %p314
    %p317 = scmp.ne.s32.totalorder %s300, %s316
    %p318 = scmp.eq.s32.totalorder %s31, 0
    %p319 = por %p317, %p318
    %s320 = ssub.s32 %s25, %s32
    %p321 = scmp.eq.s32.totalorder %s320, 0
    %s323 = sadd.s32 %s322, 1
    %s324 = scalar_select %p321, %s322, %s323
    %p327 = pneg %p321
    %p328 = scmp.eq.s32.totalorder %s25, 1
    %p329 = por %p327, %p328
    %p330 = scmp.ne.s32.totalorder %s322, %s325
    %p331 = scmp.eq.s32.totalorder %s25, 0
    %p332 = por %p330, %p331
    %p333 = scmp.ne.s32.totalorder %s322, %s325
    %p334 = scmp.eq.s32.totalorder %s30, 1
    %p335 = por %p333, %p334
    %p336 = scmp.ne.s32.totalorder %s325, %s326
    %p337 = scmp.eq.s32.totalorder %s30, 0
    %p338 = por %p336, %p337
    %p339 = scmp.ne.s32.totalorder %s325, %s326
    %p340 = scmp.eq.s32.totalorder %s31, 1
    %p341 = por %p339, %p340
    %p343 = scmp.ne.s32.totalorder %s326, %s342
    %p344 = scmp.eq.s32.totalorder %s31, 0
    %p345 = por %p343, %p344
    %s346 = ssub.s32 %s25, %s32
    %p347 = scmp.eq.s32.totalorder %s346, 0
    %s349 = sadd.s32 %s348, 1
    %s350 = scalar_select %p347, %s348, %s349
    %p353 = pneg %p347
    %p354 = scmp.eq.s32.totalorder %s25, 1
    %p355 = por %p353, %p354
    %p356 = scmp.ne.s32.totalorder %s348, %s351
    %p357 = scmp.eq.s32.totalorder %s25, 0
    %p358 = por %p356, %p357
    %p359 = scmp.ne.s32.totalorder %s348, %s351
    %p360 = scmp.eq.s32.totalorder %s30, 1
    %p361 = por %p359, %p360
    %p362 = scmp.ne.s32.totalorder %s351, %s352
    %p363 = scmp.eq.s32.totalorder %s30, 0
    %p364 = por %p362, %p363
    %p365 = scmp.ne.s32.totalorder %s351, %s352
    %p366 = scmp.eq.s32.totalorder %s31, 1
    %p367 = por %p365, %p366
    %p369 = scmp.ne.s32.totalorder %s352, %s368
    %p370 = scmp.eq.s32.totalorder %s31, 0
    %p371 = por %p369, %p370
    %s372 = ssub.s32 %s25, %s32
    %p373 = scmp.eq.s32.totalorder %s372, 0
    %s375 = sadd.s32 %s374, 1
    %s376 = scalar_select %p373, %s374, %s375
    %p379 = pneg %p373
    %p380 = scmp.eq.s32.totalorder %s25, 1
    %p381 = por %p379, %p380
    %p382 = scmp.ne.s32.totalorder %s374, %s377
    %p383 = scmp.eq.s32.totalorder %s25, 0
    %p384 = por %p382, %p383
    %p385 = scmp.ne.s32.totalorder %s374, %s377
    %p386 = scmp.eq.s32.totalorder %s30, 1
    %p387 = por %p385, %p386
    %p388 = scmp.ne.s32.totalorder %s377, %s378
    %p389 = scmp.eq.s32.totalorder %s30, 0
    %p390 = por %p388, %p389
    %p391 = scmp.ne.s32.totalorder %s377, %s378
    %p392 = scmp.eq.s32.totalorder %s31, 1
    %p393 = por %p391, %p392
    %p395 = scmp.ne.s32.totalorder %s378, %s394
    %p396 = scmp.eq.s32.totalorder %s31, 0
    %p397 = por %p395, %p396
    %s398 = ssub.s32 %s25, %s32
    %p399 = scmp.eq.s32.totalorder %s398, 0
    %s401 = sadd.s32 %s400, 1
    %s402 = scalar_select %p399, %s400, %s401
    %p405 = pneg %p399
    %p406 = scmp.eq.s32.totalorder %s25, 1
    %p407 = por %p405, %p406
    %p408 = scmp.ne.s32.totalorder %s400, %s403
    %p409 = scmp.eq.s32.totalorder %s25, 0
    %p410 = por %p408, %p409
    %p411 = scmp.ne.s32.totalorder %s400, %s403
    %p412 = scmp.eq.s32.totalorder %s30, 1
    %p413 = por %p411, %p412
    %p414 = scmp.ne.s32.totalorder %s403, %s404
    %p415 = scmp.eq.s32.totalorder %s30, 0
    %p416 = por %p414, %p415
    %p417 = scmp.ne.s32.totalorder %s403, %s404
    %p418 = scmp.eq.s32.totalorder %s31, 1
    %p419 = por %p417, %p418
    %p421 = scmp.ne.s32.totalorder %s404, %s420
    %p422 = scmp.eq.s32.totalorder %s31, 0
    %p423 = por %p421, %p422
    %s425 = sadd.s32 %s424, 1
    %p428 = scmp.eq.s32.totalorder %s25, 1
    %p429 = scmp.ne.s32.totalorder %s424, %s426
    %p430 = scmp.eq.s32.totalorder %s25, 0
    %p431 = por %p429, %p430
    %p432 = scmp.ne.s32.totalorder %s424, %s426
    %p433 = scmp.eq.s32.totalorder %s30, 1
    %p434 = por %p432, %p433
    %p435 = scmp.ne.s32.totalorder %s426, %s427
    %p436 = scmp.eq.s32.totalorder %s30, 0
    %p437 = por %p435, %p436
    %p438 = scmp.ne.s32.totalorder %s426, %s427
    %p439 = scmp.eq.s32.totalorder %s31, 1
    %p440 = por %p438, %p439
    %p442 = scmp.ne.s32.totalorder %s427, %s441
    %p443 = scmp.eq.s32.totalorder %s31, 0
    %p444 = por %p442, %p443
    %s446 = sadd.s32 %s445, 1
    %p449 = scmp.eq.s32.totalorder %s25, 1
    %p450 = scmp.ne.s32.totalorder %s445, %s447
    %p451 = scmp.eq.s32.totalorder %s25, 0
    %p452 = por %p450, %p451
    %p453 = scmp.ne.s32.totalorder %s445, %s447
    %p454 = scmp.eq.s32.totalorder %s30, 1
    %p455 = por %p453, %p454
    %p456 = scmp.ne.s32.totalorder %s447, %s448
    %p457 = scmp.eq.s32.totalorder %s30, 0
    %p458 = por %p456, %p457
    %p459 = scmp.ne.s32.totalorder %s447, %s448
    %p460 = scmp.eq.s32.totalorder %s31, 1
    %p461 = por %p459, %p460
    %p463 = scmp.ne.s32.totalorder %s448, %s462
    %p464 = scmp.eq.s32.totalorder %s31, 0
    %p465 = por %p463, %p464
    %s467 = sadd.s32 %s466, 1
    %p470 = scmp.eq.s32.totalorder %s25, 1
    %p471 = scmp.ne.s32.totalorder %s466, %s468
    %p472 = scmp.eq.s32.totalorder %s25, 0
    %p473 = por %p471, %p472
    %p474 = scmp.ne.s32.totalorder %s466, %s468
    %p475 = scmp.eq.s32.totalorder %s30, 1
    %p476 = por %p474, %p475
    %p477 = scmp.ne.s32.totalorder %s468, %s469
    %p478 = scmp.eq.s32.totalorder %s30, 0
    %p479 = por %p477, %p478
    %p480 = scmp.ne.s32.totalorder %s468, %s469
    %p481 = scmp.eq.s32.totalorder %s31, 1
    %p482 = por %p480, %p481
    %p484 = scmp.ne.s32.totalorder %s469, %s483
    %p485 = scmp.eq.s32.totalorder %s31, 0
    %p486 = por %p484, %p485
    %s488 = sadd.s32 %s487, 1
    %p491 = scmp.eq.s32.totalorder %s25, 1
    %p492 = scmp.ne.s32.totalorder %s487, %s489
    %p493 = scmp.eq.s32.totalorder %s25, 0
    %p494 = por %p492, %p493
    %p495 = scmp.ne.s32.totalorder %s487, %s489
    %p496 = scmp.eq.s32.totalorder %s30, 1
    %p497 = por %p495, %p496
    %p498 = scmp.ne.s32.totalorder %s489, %s490
    %p499 = scmp.eq.s32.totalorder %s30, 0
    %p500 = por %p498, %p499
    %p501 = scmp.ne.s32.totalorder %s489, %s490
    %p502 = scmp.eq.s32.totalorder %s31, 1
    %p503 = por %p501, %p502
    %p505 = scmp.ne.s32.totalorder %s490, %s504
    %p506 = scmp.eq.s32.totalorder %s31, 0
    %p507 = por %p505, %p506
    %p508 = scmp.le.s32.totalorder 1, %s25
    %p509 = scmp.lt.s32.totalorder %s25, 3
    %p510 = pnand %p508, %p509
    %p511 = pneg %p510
    // Predicated region
    $region9: #{gpt_forward.1} parent=5 // pred_check
      _
    $region10: #{gpt_forward.1} parent=5 // pred_check_branch
      %513 = sbr.rel (%p510) target = $region12
    $region11: #{gpt_forward.1} parent=5 // pred_region
      %s514 = ssub.s32 %s25, 1
      // Predicated region
      $region13: #{gpt_forward.1} parent=11 // pred_check
        %p515 = pneg %p46
      $region14: #{gpt_forward.1} parent=11 // pred_check_branch
        %517 = sbr.rel (%p515) target = $region16
      $region15: #{gpt_forward.1} parent=11 // pred_region
        _
      $region16: #{gpt_forward.1} parent=11 // pred_fallthru
        _
      // Predicated region
      $region17: #{gpt_forward.1} parent=11 // pred_check
        %p518 = pneg %p67
      $region18: #{gpt_forward.1} parent=11 // pred_check_branch
        %520 = sbr.rel (%p518) target = $region20
      $region19: #{gpt_forward.1} parent=11 // pred_region
        _
      $region20: #{gpt_forward.1} parent=11 // pred_fallthru
        _
      // Predicated region
      $region21: #{gpt_forward.1} parent=11 // pred_check
        %p521 = pneg %p88
      $region22: #{gpt_forward.1} parent=11 // pred_check_branch
        %523 = sbr.rel (%p521) target = $region24
      $region23: #{gpt_forward.1} parent=11 // pred_region
        _
      $region24: #{gpt_forward.1} parent=11 // pred_fallthru
        _
      // Predicated region
      $region25: #{gpt_forward.1} parent=11 // pred_check
        %p524 = pneg %p109
      $region26: #{gpt_forward.1} parent=11 // pred_check_branch
        %526 = sbr.rel (%p524) target = $region28
      $region27: #{gpt_forward.1} parent=11 // pred_region
        _
      $region28: #{gpt_forward.1} parent=11 // pred_fallthru
        _
      // Predicated region
      $region29: #{gpt_forward.1} parent=11 // pred_check
        %p527 = pneg %p130
      $region30: #{gpt_forward.1} parent=11 // pred_check_branch
        %529 = sbr.rel (%p527) target = $region32
      $region31: #{gpt_forward.1} parent=11 // pred_region
        _
      $region32: #{gpt_forward.1} parent=11 // pred_fallthru
        _
      // Predicated region
      $region33: #{gpt_forward.1} parent=11 // pred_check
        %p530 = pneg %p437
      $region34: #{gpt_forward.1} parent=11 // pred_check_branch
        %532 = sbr.rel (%p530) target = $region36
      $region35: #{gpt_forward.1} parent=11 // pred_region
        _
      $region36: #{gpt_forward.1} parent=11 // pred_fallthru
        _
      // Predicated region
      $region37: #{gpt_forward.1} parent=11 // pred_check
        %p533 = pneg %p458
      $region38: #{gpt_forward.1} parent=11 // pred_check_branch
        %535 = sbr.rel (%p533) target = $region40
      $region39: #{gpt_forward.1} parent=11 // pred_region
        _
      $region40: #{gpt_forward.1} parent=11 // pred_fallthru
        _
      // Predicated region
      $region41: #{gpt_forward.1} parent=11 // pred_check
        %p536 = pneg %p479
      $region42: #{gpt_forward.1} parent=11 // pred_check_branch
        %538 = sbr.rel (%p536) target = $region44
      $region43: #{gpt_forward.1} parent=11 // pred_region
        _
      $region44: #{gpt_forward.1} parent=11 // pred_fallthru
        _
    $region12: #{gpt_forward.1} parent=5 // pred_fallthru
      _
    %p539 = scmp.lt.s32.totalorder %s25, 2
    // Predicated region
    $region45: #{gpt_forward.1} parent=5 // pred_check
      %p540 = pneg %p539
    $region46: #{gpt_forward.1} parent=5 // pred_check_branch
      %542 = sbr.rel (%p540) target = $region48
    $region47: #{gpt_forward.1} parent=5 // pred_region
      // Predicated region
      $region49: #{gpt_forward.1} parent=47 // pred_check
        %p543 = pneg %p150
      $region50: #{gpt_forward.1} parent=47 // pred_check_branch
        %545 = sbr.rel (%p543) target = $region52
      $region51: #{gpt_forward.1} parent=47 // pred_region
        %p546 = scmp.lt.s32.totalorder %s25, 1
        %s547 = scalar_select %p546, %s25, 1
        %s548 = scalar_lea.vmem %s5, %s547
      $region52: #{gpt_forward.1} parent=47 // pred_fallthru
        _
      // Predicated region
      $region53: #{gpt_forward.1} parent=47 // pred_check
        %p549 = pneg %p176
      $region54: #{gpt_forward.1} parent=47 // pred_check_branch
        %551 = sbr.rel (%p549) target = $region56
      $region55: #{gpt_forward.1} parent=47 // pred_region
        %p552 = scmp.lt.s32.totalorder %s25, 1
        %s553 = scalar_select %p552, %s25, 1
        %s554 = scalar_lea.vmem %s6, %s553
      $region56: #{gpt_forward.1} parent=47 // pred_fallthru
        _
      // Predicated region
      $region57: #{gpt_forward.1} parent=47 // pred_check
        %p555 = pneg %p202
      $region58: #{gpt_forward.1} parent=47 // pred_check_branch
        %557 = sbr.rel (%p555) target = $region60
      $region59: #{gpt_forward.1} parent=47 // pred_region
        %p558 = scmp.lt.s32.totalorder %s25, 1
        %s559 = scalar_select %p558, %s25, 1
        %s560 = scalar_lea.vmem %s7, %s559
      $region60: #{gpt_forward.1} parent=47 // pred_fallthru
        _
      // Predicated region
      $region61: #{gpt_forward.1} parent=47 // pred_check
        %p561 = pneg %p228
      $region62: #{gpt_forward.1} parent=47 // pred_check_branch
        %563 = sbr.rel (%p561) target = $region64
      $region63: #{gpt_forward.1} parent=47 // pred_region
        %p564 = scmp.lt.s32.totalorder %s25, 1
        %s565 = scalar_select %p564, %s25, 1
        %s566 = scalar_lea.vmem %s8, %s565
      $region64: #{gpt_forward.1} parent=47 // pred_fallthru
        _
      // Predicated region
      $region65: #{gpt_forward.1} parent=47 // pred_check
        %p567 = pneg %p254
      $region66: #{gpt_forward.1} parent=47 // pred_check_branch
        %569 = sbr.rel (%p567) target = $region68
      $region67: #{gpt_forward.1} parent=47 // pred_region
        %p570 = scmp.lt.s32.totalorder %s25, 1
        %s571 = scalar_select %p570, %s25, 1
        %s572 = smul.addr %s571, 4
        %s573 = smul.addr %s572, 8
        %s574 = scalar_lea.vmem %s9, %s573
      $region68: #{gpt_forward.1} parent=47 // pred_fallthru
        _
      // Predicated region
      $region69: #{gpt_forward.1} parent=47 // pred_check
        %p575 = pneg %p280
      $region70: #{gpt_forward.1} parent=47 // pred_check_branch
        %577 = sbr.rel (%p575) target = $region72
      $region71: #{gpt_forward.1} parent=47 // pred_region
        %p578 = scmp.lt.s32.totalorder %s25, 1
        %s579 = scalar_select %p578, %s25, 1
        %s580 = smul.addr %s579, 4
        %s581 = smul.addr %s580, 8
        %s582 = scalar_lea.vmem %s10, %s581
      $region72: #{gpt_forward.1} parent=47 // pred_fallthru
        _
      // Predicated region
      $region73: #{gpt_forward.1} parent=47 // pred_check
        %p583 = pneg %p306
      $region74: #{gpt_forward.1} parent=47 // pred_check_branch
        %585 = sbr.rel (%p583) target = $region76
      $region75: #{gpt_forward.1} parent=47 // pred_region
        %p586 = scmp.lt.s32.totalorder %s25, 1
        %s587 = scalar_select %p586, %s25, 1
        %s588 = scalar_lea.vmem %s11, %s587
      $region76: #{gpt_forward.1} parent=47 // pred_fallthru
        _
      // Predicated region
      $region77: #{gpt_forward.1} parent=47 // pred_check
        %p589 = pneg %p332
      $region78: #{gpt_forward.1} parent=47 // pred_check_branch
        %591 = sbr.rel (%p589) target = $region80
      $region79: #{gpt_forward.1} parent=47 // pred_region
        %p592 = scmp.lt.s32.totalorder %s25, 1
        %s593 = scalar_select %p592, %s25, 1
        %s594 = smul.addr %s593, 4
        %s595 = smul.addr %s594, 8
        %s596 = scalar_lea.vmem %s12, %s595
      $region80: #{gpt_forward.1} parent=47 // pred_fallthru
        _
      // Predicated region
      $region81: #{gpt_forward.1} parent=47 // pred_check
        %p597 = pneg %p358
      $region82: #{gpt_forward.1} parent=47 // pred_check_branch
        %599 = sbr.rel (%p597) target = $region84
      $region83: #{gpt_forward.1} parent=47 // pred_region
        %p600 = scmp.lt.s32.totalorder %s25, 1
        %s601 = scalar_select %p600, %s25, 1
        %s602 = scalar_lea.vmem %s13, %s601
      $region84: #{gpt_forward.1} parent=47 // pred_fallthru
        _
      // Predicated region
      $region85: #{gpt_forward.1} parent=47 // pred_check
        %p603 = pneg %p384
      $region86: #{gpt_forward.1} parent=47 // pred_check_branch
        %605 = sbr.rel (%p603) target = $region88
      $region87: #{gpt_forward.1} parent=47 // pred_region
        %p606 = scmp.lt.s32.totalorder %s25, 1
        %s607 = scalar_select %p606, %s25, 1
        %s608 = smul.addr %s607, 16
        %s609 = smul.addr %s608, 8
        %s610 = scalar_lea.vmem %s14, %s609
      $region88: #{gpt_forward.1} parent=47 // pred_fallthru
        _
      // Predicated region
      $region89: #{gpt_forward.1} parent=47 // pred_check
        %p611 = pneg %p410
      $region90: #{gpt_forward.1} parent=47 // pred_check_branch
        %613 = sbr.rel (%p611) target = $region92
      $region91: #{gpt_forward.1} parent=47 // pred_region
        %p614 = scmp.lt.s32.totalorder %s25, 1
        %s615 = scalar_select %p614, %s25, 1
        %s616 = scalar_lea.vmem %s15, %s615
      $region92: #{gpt_forward.1} parent=47 // pred_fallthru
        _
    $region48: #{gpt_forward.1} parent=5 // pred_fallthru
      _
    %p617 = scmp.le.s32.totalorder 1, %s25
    %p618 = scmp.lt.s32.totalorder %s25, 3
    %p619 = pnand %p617, %p618
    %p620 = pneg %p619
    // Predicated region
    $region93: #{gpt_forward.1} parent=5 // pred_check
      _
    $region94: #{gpt_forward.1} parent=5 // pred_check_branch
      %622 = sbr.rel (%p619) target = $region96
    $region95: #{gpt_forward.1} parent=5 // pred_region
      %s623 = ssub.s32 %s25, 1
      %p624 = pneg %p46
      %p625 = pneg %p43
      %p626 = pneg %p67
      %p627 = pneg %p64
      %p628 = pneg %p88
      %p629 = pneg %p85
      %p630 = pneg %p109
      %p631 = pneg %p106
      %p632 = pneg %p130
      %p633 = pneg %p127
      %p634 = scmp.lt.s32.totalorder %s30, 1
      %s635 = scalar_select %p634, %s30, 1
      %s636 = scalar_lea.vmem %s5, %s635
      %p637 = pneg %p156
      %p638 = pneg %p153
      %p639 = scmp.lt.s32.totalorder %s30, 1
      %s640 = scalar_select %p639, %s30, 1
      %s641 = scalar_lea.vmem %s6, %s640
      %p642 = pneg %p182
      %p643 = pneg %p179
      %p644 = scmp.lt.s32.totalorder %s30, 1
      %s645 = scalar_select %p644, %s30, 1
      %s646 = scalar_lea.vmem %s7, %s645
      %p647 = pneg %p208
      %p648 = pneg %p205
      %p649 = scmp.lt.s32.totalorder %s30, 1
      %s650 = scalar_select %p649, %s30, 1
      %s651 = scalar_lea.vmem %s8, %s650
      %p652 = pneg %p234
      %p653 = pneg %p231
      %p654 = scmp.lt.s32.totalorder %s30, 1
      %s655 = scalar_select %p654, %s30, 1
      %s656 = smul.addr %s655, 4
      %s657 = smul.addr %s656, 8
      %s658 = scalar_lea.vmem %s9, %s657
      %p659 = pneg %p260
      %p660 = pneg %p257
      %p661 = scmp.lt.s32.totalorder %s30, 1
      %s662 = scalar_select %p661, %s30, 1
      %s663 = smul.addr %s662, 4
      %s664 = smul.addr %s663, 8
      %s665 = scalar_lea.vmem %s10, %s664
      %p666 = pneg %p286
      %p667 = pneg %p283
      %p668 = scmp.lt.s32.totalorder %s30, 1
      %s669 = scalar_select %p668, %s30, 1
      %s670 = scalar_lea.vmem %s11, %s669
      %p671 = pneg %p312
      %p672 = pneg %p309
      %p673 = scmp.lt.s32.totalorder %s30, 1
      %s674 = scalar_select %p673, %s30, 1
      %s675 = smul.addr %s674, 4
      %s676 = smul.addr %s675, 8
      %s677 = scalar_lea.vmem %s12, %s676
      %p678 = pneg %p338
      %p679 = pneg %p335
      %p680 = scmp.lt.s32.totalorder %s30, 1
      %s681 = scalar_select %p680, %s30, 1
      %s682 = scalar_lea.vmem %s13, %s681
      %p683 = pneg %p364
      %p684 = pneg %p361
      %p685 = scmp.lt.s32.totalorder %s30, 1
      %s686 = scalar_select %p685, %s30, 1
      %s687 = smul.addr %s686, 16
      %s688 = smul.addr %s687, 8
      %s689 = scalar_lea.vmem %s14, %s688
      %p690 = pneg %p390
      %p691 = pneg %p387
      %p692 = scmp.lt.s32.totalorder %s30, 1
      %s693 = scalar_select %p692, %s30, 1
      %s694 = scalar_lea.vmem %s15, %s693
      %p695 = pneg %p416
      %p696 = pneg %p413
      %p697 = pneg %p437
      %p698 = pneg %p434
      %p699 = pneg %p458
      %p700 = pneg %p455
      %p701 = pneg %p479
      %p702 = pneg %p476
      %p703 = pneg %p500
      %p704 = pneg %p497
      %p705 = scmp.lt.s32.totalorder %s30, 1
      %s706 = scalar_select %p705, %s30, 1
      %s707 = scalar_lea.vmem %s5, %s706
      %p708 = scmp.lt.s32.totalorder %s30, 1
      %s709 = scalar_select %p708, %s30, 1
      %s710 = scalar_lea.vmem %s6, %s709
      %p711 = scmp.lt.s32.totalorder %s30, 1
      %s712 = scalar_select %p711, %s30, 1
      %s713 = scalar_lea.vmem %s7, %s712
      %p714 = scmp.lt.s32.totalorder %s30, 1
      %s715 = scalar_select %p714, %s30, 1
      %s716 = scalar_lea.vmem %s8, %s715
      %p717 = scmp.lt.s32.totalorder %s30, 1
      %s718 = scalar_select %p717, %s30, 1
      %s719 = smul.addr %s718, 4
      %s720 = smul.addr %s719, 8
      %s721 = scalar_lea.vmem %s9, %s720
      %p722 = scmp.lt.s32.totalorder %s30, 1
      %s723 = scalar_select %p722, %s30, 1
      %s724 = smul.addr %s723, 4
      %s725 = smul.addr %s724, 8
      %s726 = scalar_lea.vmem %s10, %s725
      %p727 = scmp.lt.s32.totalorder %s30, 1
      %s728 = scalar_select %p727, %s30, 1
      %s729 = scalar_lea.vmem %s11, %s728
      %p730 = scmp.lt.s32.totalorder %s30, 1
      %s731 = scalar_select %p730, %s30, 1
      %s732 = smul.addr %s731, 4
      %s733 = smul.addr %s732, 8
      %s734 = scalar_lea.vmem %s12, %s733
      %p735 = scmp.lt.s32.totalorder %s30, 1
      %s736 = scalar_select %p735, %s30, 1
      %s737 = scalar_lea.vmem %s13, %s736
      %p738 = scmp.lt.s32.totalorder %s30, 1
      %s739 = scalar_select %p738, %s30, 1
      %s740 = smul.addr %s739, 16
      %s741 = smul.addr %s740, 8
      %s742 = scalar_lea.vmem %s14, %s741
      %p743 = scmp.lt.s32.totalorder %s30, 1
      %s744 = scalar_select %p743, %s30, 1
      %s745 = scalar_lea.vmem %s15, %s744
      %p747 = scmp.eq.s32.totalorder %s30, 0
      // Predicated region
      $region97: #{gpt_forward.1} parent=95 // pred_check
        %p748 = pneg %p747
      $region98: #{gpt_forward.1} parent=95 // pred_check_branch
        %750 = sbr.rel (%p748) target = $region100
      $region99: #{gpt_forward.1} parent=95 // pred_region
        %v751 = vld [vmem:[%s0] sm:$0xff]
        %v752 = vld [vmem:[%s0 + $0x8] sm:$0xff]
        %v753 = vlaneseq
        %v754 = vand.u32 %v753, 127
        %755 = vset.pattern.permute.xlu0 0
        %756 = vperm.xlu0 %755, %v751
        %v757 = vpop.permute.xlu0 %756
        %758 = vset.pattern.permute.xlu0 0
        %759 = vperm.xlu0 %758, %v752
        %v760 = vpop.permute.xlu0 %759
        %vm761 = vcmp.eq.s32.totalorder %v757, %v754
        %vm762 = vcmp.eq.s32.totalorder %v760, %v754
        %v763 = vsel %vm761, 1, 0
        %v764 = vsel %vm762, 1, 0
        %v765 = vcvt.s32.f32 %v763
        %v766 = vcvt.s32.f32 %v764
        %v767 = vld [vmem:[%s2] sm:$0xff]
        %v768 = vld [vmem:[%s2 + $0x8] sm:$0xff]
        %v769 = vld [vmem:[%s2 + $0x10] sm:$0xff]
        %v770 = vld [vmem:[%s2 + $0x18] sm:$0xff]
        %v771 = vld [vmem:[%s2 + $0x20] sm:$0xff]
        %v772 = vld [vmem:[%s2 + $0x28] sm:$0xff]
        %v773 = vld [vmem:[%s2 + $0x30] sm:$0xff]
        %v774 = vld [vmem:[%s2 + $0x38] sm:$0xff]
        %v775 = vld [vmem:[%s1] sm:$0xff]
        %v776 = vld [vmem:[%s1 + $0x8] sm:$0xff]
        %vm777 = vcmask 523264
        %v779 = vsel %vm777, %v765, 0
        %v782 = vsel %vm777, %v766, 0
        %784 = vmatprep.subr.mxu0 0.0
        %785 = vmatpush1.msra.mxu0 %v767
        %786 = vmatprep.subr.mxu0 0.0
        %787 = vmatpush1.msra.mxu0 %v768
        %788 = vmatprep.subr.mxu0 0.0
        %789 = vmatpush1.msra.mxu0 %v769
        %790 = vmatprep.subr.mxu0 0.0
        %791 = vmatpush1.msra.mxu0 %v770
        %792 = vmatprep.subr.mxu0 0.0
        %793 = vmatpush1.msra.mxu0 %v771
        %794 = vmatprep.subr.mxu0 0.0
        %795 = vmatpush1.msra.mxu0 %v772
        %796 = vmatprep.subr.mxu0 0.0
        %797 = vmatpush1.msra.mxu0 %v773
        %798 = vmatprep.subr.mxu0 0.0
        %799 = vmatpush1.msra.mxu0 %v774
        %800 = vmatprep.subr.mxu0 0.0
        %801 = vmatpush1.msra.mxu0 0.0
        %802 = vmatprep.subr.mxu0 0.0
        %803 = vmatpush1.msra.mxu0 0.0
        %804 = vmatprep.subr.mxu0 0.0
        %805 = vmatpush1.msra.mxu0 0.0
        %806 = vmatprep.subr.mxu0 0.0
        %807 = vmatpush1.msra.mxu0 0.0
        %808 = vmatprep.subr.mxu0 0.0
        %809 = vmatpush1.msra.mxu0 0.0
        %810 = vmatprep.subr.mxu0 0.0
        %811 = vmatpush1.msra.mxu0 0.0
        %812 = vmatprep.subr.mxu0 0.0
        %813 = vmatpush1.msra.mxu0 0.0
        %814 = vmatprep.subr.mxu0 0.0
        %815 = vmatpush1.msra.mxu0 0.0
        %816 = vmatprep.subr.mxu0 0.0
        %817 = vmatpush1.msra.mxu0 0.0
        %818 = vmatprep.subr.mxu0 0.0
        %819 = vmatpush1.msra.mxu0 0.0
        %820 = vmatprep.subr.mxu0 0.0
        %821 = vmatpush1.msra.mxu0 0.0
        %822 = vmatprep.subr.mxu0 0.0
        %823 = vmatpush1.msra.mxu0 0.0
        %824 = vmatprep.subr.mxu0 0.0
        %825 = vmatpush1.msra.mxu0 0.0
        %826 = vmatprep.subr.mxu0 0.0
        %827 = vmatpush1.msra.mxu0 0.0
        %828 = vmatprep.subr.mxu0 0.0
        %829 = vmatpush1.msra.mxu0 0.0
        %830 = vmatprep.subr.mxu0 0.0
        %831 = vmatpush1.msra.mxu0 0.0
        %832 = vmatprep.subr.mxu0 0.0
        %833 = vmatpush1.msra.mxu0 0.0
        %834 = vmatprep.subr.mxu0 0.0
        %835 = vmatpush1.msra.mxu0 0.0
        %836 = vmatprep.subr.mxu0 0.0
        %837 = vmatpush1.msra.mxu0 0.0
        %838 = vmatprep.subr.mxu0 0.0
        %839 = vmatpush1.msra.mxu0 0.0
        %840 = vmatprep.subr.mxu0 0.0
        %841 = vmatpush1.msra.mxu0 0.0
        %842 = vmatprep.subr.mxu0 0.0
        %843 = vmatpush1.msra.mxu0 0.0
        %844 = vmatprep.subr.mxu0 0.0
        %845 = vmatpush1.msra.mxu0 0.0
        %846 = vmatprep.subr.mxu0 0.0
        %847 = vmatpush1.msra.mxu0 0.0
        %848 = vmatprep.mubr.f32.mxu0 0.0
        %849 = vmatmul.mubr.f32.gmra.mrb[0].mxu0 %v779
        %v850 = vpop.f32.mrb[0].mxu0
        %v851 = vadd.f32 %v775, %v850
        %v852 = vpop.f32.mrb[0].mxu0
        %853 = vmatprep.mubr.f32.mxu0 0.0
        %854 = vmatmul.mubr.f32.gmra.mrb[0].mxu0 %v782
        %v855 = vpop.f32.mrb[0].mxu0
        %v856 = vadd.f32 %v776, %v855
        %v857 = vpop.f32.mrb[0].mxu0
        %858 = vdwg.mxu0
        %vm859 = vcmask 261120
        %860 = vst.msk [vmem:[#allocation2] sm:$0xff] %vm859, %v851
        %861 = vst.msk [vmem:[#allocation2 + $0x8] sm:$0xff] %vm859, %v856
      $region100: #{gpt_forward.1} parent=95 // pred_fallthru
        _
      %v862 = vld [vmem:[#allocation2] sm:$0xff]
      %v863 = vld [vmem:[#allocation2 + $0x8] sm:$0xff]
      %v864 = vld [vmem:[%s3] sm:$0xff]
      %v865 = vld [vmem:[%s3 + $0x8] sm:$0xff]
      %v866 = vld [vmem:[%s3 + $0x10] sm:$0xff]
      %v867 = vld [vmem:[%s3 + $0x18] sm:$0xff]
      %v868 = vld [vmem:[%s707] sm:$0x1]
      %v869 = vld [vmem:[%s710] sm:$0x1]
      %vm870 = vcmask 261120
      %v871 = vsel %vm870, %v862, 0.0
      %872 = vadd.xlane.f32.xlu0 %v871
      %v873 = vpop.xlane.xlu0 %872
      %v874 = vsel %vm870, %v863, 0.0
      %875 = vadd.xlane.f32.xlu0 %v874
      %v876 = vpop.xlane.xlu0 %875
      %v877 = vrcp.pop 32.0
      %v878 = vmul.f32 %v873, %v877
      %v879 = vmul.f32 %v876, %v877
      %v880 = vsub.f32 %v862, %v878
      %v881 = vsub.f32 %v863, %v879
      %v882 = vmul.f32 %v880, %v880
      %v883 = vmul.f32 %v881, %v881
      %v884 = vsel %vm870, %v882, 0.0
      %885 = vadd.xlane.f32.xlu0 %v884
      %v886 = vpop.xlane.xlu0 %885
      %v887 = vsel %vm870, %v883, 0.0
      %888 = vadd.xlane.f32.xlu0 %v887
      %v889 = vpop.xlane.xlu0 %888
      %v890 = vmul.f32 %v886, 0.032258064
      %v891 = vmul.f32 %v889, 0.032258064
      %v892 = vadd.f32 %v890, 1e-05
      %v893 = vadd.f32 %v891, 1e-05
      %v894 = vrsqrt.pop %v892
      %v895 = vrsqrt.pop %v893
      %v896 = vmul.f32 %v880, %v894
      %v897 = vmul.f32 %v881, %v895
      %v899 = vlaneseq
      %v900 = vshrl.u32 %v899, 7
      %v901 = vsub.s32 0, %v900
      %v902 = vrot.slane %v868, %v901
      %v904 = vmul.f32 %v902, %v896
      %v905 = vmul.f32 %v902, %v897
      %v907 = vlaneseq
      %v908 = vshrl.u32 %v907, 7
      %v909 = vsub.s32 0, %v908
      %v910 = vrot.slane %v869, %v909
      %v912 = vadd.f32 %v904, %v910
      %v913 = vadd.f32 %v905, %v910
      %v914 = vpack.c.bf16 %v913, %v912
      %v915 = vld [vmem:[%s721] sm:$0xff]
      %v916 = vld [vmem:[%s721 + $0x8] sm:$0xff]
      %v917 = vld [vmem:[%s721 + $0x10] sm:$0xff]
      %v918 = vld [vmem:[%s721 + $0x18] sm:$0xff]
      %v919 = vpack.c.bf16 %v916, %v915
      %v920 = vpack.c.bf16 %v918, %v917
      %v922 = vsel %vm870, %v914, 0
      %924 = vmatprep.subr.bf16.mxu0 0
      %925 = vmatpush1.bf16.msra.mxu0 %v919
      %926 = vmatprep.subr.bf16.mxu0 0
      %927 = vmatpush1.bf16.msra.mxu0 %v920
      %928 = vmatprep.subr.bf16.mxu0 0
      %929 = vmatpush1.bf16.msra.mxu0 0
      %930 = vmatprep.subr.bf16.mxu0 0
      %931 = vmatpush1.bf16.msra.mxu0 0
      %932 = vmatprep.subr.bf16.mxu0 0
      %933 = vmatpush1.bf16.msra.mxu0 0
      %934 = vmatprep.subr.bf16.mxu0 0
      %935 = vmatpush1.bf16.msra.mxu0 0
      %936 = vmatprep.subr.bf16.mxu0 0
      %937 = vmatpush1.bf16.msra.mxu0 0
      %938 = vmatprep.subr.bf16.mxu0 0
      %939 = vmatpush1.bf16.msra.mxu0 0
      %940 = vmatprep.subr.bf16.mxu0 0
      %941 = vmatpush1.bf16.msra.mxu0 0
      %942 = vmatprep.subr.bf16.mxu0 0
      %943 = vmatpush1.bf16.msra.mxu0 0
      %944 = vmatprep.subr.bf16.mxu0 0
      %945 = vmatpush1.bf16.msra.mxu0 0
      %946 = vmatprep.subr.bf16.mxu0 0
      %947 = vmatpush1.bf16.msra.mxu0 0
      %948 = vmatprep.subr.bf16.mxu0 0
      %949 = vmatpush1.bf16.msra.mxu0 0
      %950 = vmatprep.subr.bf16.mxu0 0
      %951 = vmatpush1.bf16.msra.mxu0 0
      %952 = vmatprep.subr.bf16.mxu0 0
      %953 = vmatpush1.bf16.msra.mxu0 0
      %954 = vmatprep.subr.bf16.mxu0 0
      %955 = vmatpush1.bf16.msra.mxu0 0
      %956 = vmatprep.mubr.bf16.mxu0 0
      %957 = vmatmul.mubr.bf16.gmra.mrb[0].mxu0 %v922
      %v958 = vpop.f32.mrb[0].mxu0
      %v959 = vadd.f32 0.0, %v958
      %v960 = vpop.f32.mrb[0].mxu0
      %v961 = vpop.f32.mrb[0].mxu0
      %v962 = vadd.f32 0.0, %v961
      %v963 = vpop.f32.mrb[0].mxu0
      %964 = vdwg.mxu0
      %v965 = vmul.f32 %v959, 0.35355338
      %v966 = vmul.f32 %v962, 0.35355338
      %v967 = vmul.f32 %v965, %v864
      %v968 = vmul.f32 %v965, %v865
      %v969 = vmul.f32 %v965, %v866
      %v970 = vmul.f32 %v965, %v867
      %v971 = vmul.f32 %v966, %v864
      %v972 = vmul.f32 %v966, %v865
      %v973 = vmul.f32 %v966, %v866
      %v974 = vmul.f32 %v966, %v867
      %v975 = vpack.c.bf16 %v968, %v967
      %v976 = vpack.c.bf16 %v970, %v969
      %v977 = vpack.c.bf16 %v972, %v971
      %v978 = vpack.c.bf16 %v974, %v973
      %v979 = vpack.c.bf16 %v959, %v959
      %v980 = vpack.c.bf16 %v962, %v962
      %v981 = vld [vmem:[%s4] sm:$0xff]
      %v982 = vld [vmem:[%s4 + $0x8] sm:$0xff]
      %v983 = vld [vmem:[%s4 + $0x10] sm:$0xff]
      %v984 = vld [vmem:[%s4 + $0x18] sm:$0xff]
      %986 = vrot.lane.b32.xlu0 %v979, 96
      %v987 = vpop.permute.xlu0 %986
      %v989 = vsel %vm870, %v975, 0
      %v992 = vsel %vm870, %v976, 0
      %v995 = vsel %vm870, %v987, 0
      %997 = vmatprep.subr.bf16.mxu0 0
      %998 = vmatpush1.bf16.xpose.msra.mxu0 %v995
      %999 = vmatprep.subr.bf16.mxu0 0
      %1000 = vmatpush1.bf16.xpose.msra.mxu0 0
      %1001 = vmatprep.subr.bf16.mxu0 0
      %1002 = vmatpush1.bf16.xpose.msra.mxu0 0
      %1003 = vmatprep.subr.bf16.mxu0 0
      %1004 = vmatpush1.bf16.xpose.msra.mxu0 0
      %1005 = vmatprep.subr.bf16.mxu0 0
      %1006 = vmatpush1.bf16.xpose.msra.mxu0 0
      %1007 = vmatprep.subr.bf16.mxu0 0
      %1008 = vmatpush1.bf16.xpose.msra.mxu0 0
      %1009 = vmatprep.subr.bf16.mxu0 0
      %1010 = vmatpush1.bf16.xpose.msra.mxu0 0
      %1011 = vmatprep.subr.bf16.mxu0 0
      %1012 = vmatpush1.bf16.xpose.msra.mxu0 0
      %1013 = vmatprep.subr.bf16.mxu0 0
      %1014 = vmatpush1.bf16.xpose.msra.mxu0 0
      %1015 = vmatprep.subr.bf16.mxu0 0
      %1016 = vmatpush1.bf16.xpose.msra.mxu0 0
      %1017 = vmatprep.subr.bf16.mxu0 0
      %1018 = vmatpush1.bf16.xpose.msra.mxu0 0
      %1019 = vmatprep.subr.bf16.mxu0 0
      %1020 = vmatpush1.bf16.xpose.msra.mxu0 0
      %1021 = vmatprep.subr.bf16.mxu0 0
      %1022 = vmatpush1.bf16.xpose.msra.mxu0 0
      %1023 = vmatprep.subr.bf16.mxu0 0
      %1024 = vmatpush1.bf16.xpose.msra.mxu0 0
      %1025 = vmatprep.subr.bf16.mxu0 0
      %1026 = vmatpush1.bf16.xpose.msra.mxu0 0
      %1027 = vmatprep.subr.bf16.mxu0 0
      %1028 = vmatpush1.bf16.xpose.msra.mxu0 0
      %1029 = vmatprep.mubr.bf16.mxu0 0
      %1030 = vmatmul.mubr.bf16.gmra.mrb[0].mxu0 %v989
      %v1031 = vpop.f32.mrb[0].mxu0
      %v1032 = vadd.f32 %v981, %v1031
      %v1033 = vpop.f32.mrb[0].mxu0
      %v1034 = vpop.f32.mrb[0].mxu0
      %v1035 = vadd.f32 %v982, %v1034
      %v1036 = vpop.f32.mrb[0].mxu0
      %1037 = vmatprep.mubr.bf16.mxu0 0
      %1038 = vmatmul.mubr.bf16.gmra.mrb[0].mxu0 %v992
      %v1039 = vpop.f32.mrb[0].mxu0
      %v1040 = vadd.f32 %v983, %v1039
      %v1041 = vpop.f32.mrb[0].mxu0
      %v1042 = vpop.f32.mrb[0].mxu0
      %v1043 = vadd.f32 %v984, %v1042
      %v1044 = vpop.f32.mrb[0].mxu0
      %1045 = vdwg.mxu0
      %1047 = vrot.lane.b32.xlu0 %v980, 96
      %v1048 = vpop.permute.xlu0 %1047
      %v1050 = vsel %vm870, %v977, 0
      %v1053 = vsel %vm870, %v978, 0
      %v1056 = vsel %vm870, %v1048, 0
      %1058 = vmatprep.subr.bf16.mxu0 0
      %1059 = vmatpush1.bf16.xpose.msra.mxu0 %v1056
      %1060 = vmatprep.subr.bf16.mxu0 0
      %1061 = vmatpush1.bf16.xpose.msra.mxu0 0
      %1062 = vmatprep.subr.bf16.mxu0 0
      %1063 = vmatpush1.bf16.xpose.msra.mxu0 0
      %1064 = vmatprep.subr.bf16.mxu0 0
      %1065 = vmatpush1.bf16.xpose.msra.mxu0 0
      %1066 = vmatprep.subr.bf16.mxu0 0
      %1067 = vmatpush1.bf16.xpose.msra.mxu0 0
      %1068 = vmatprep.subr.bf16.mxu0 0
      %1069 = vmatpush1.bf16.xpose.msra.mxu0 0
      %1070 = vmatprep.subr.bf16.mxu0 0
      %1071 = vmatpush1.bf16.xpose.msra.mxu0 0
      %1072 = vmatprep.subr.bf16.mxu0 0
      %1073 = vmatpush1.bf16.xpose.msra.mxu0 0
      %1074 = vmatprep.subr.bf16.mxu0 0
      %1075 = vmatpush1.bf16.xpose.msra.mxu0 0
      %1076 = vmatprep.subr.bf16.mxu0 0
      %1077 = vmatpush1.bf16.xpose.msra.mxu0 0
      %1078 = vmatprep.subr.bf16.mxu0 0
      %1079 = vmatpush1.bf16.xpose.msra.mxu0 0
      %1080 = vmatprep.subr.bf16.mxu0 0
      %1081 = vmatpush1.bf16.xpose.msra.mxu0 0
      %1082 = vmatprep.subr.bf16.mxu0 0
      %1083 = vmatpush1.bf16.xpose.msra.mxu0 0
      %1084 = vmatprep.subr.bf16.mxu0 0
      %1085 = vmatpush1.bf16.xpose.msra.mxu0 0
      %1086 = vmatprep.subr.bf16.mxu0 0
      %1087 = vmatpush1.bf16.xpose.msra.mxu0 0
      %1088 = vmatprep.subr.bf16.mxu0 0
      %1089 = vmatpush1.bf16.xpose.msra.mxu0 0
      %1090 = vmatprep.mubr.bf16.mxu0 0
      %1091 = vmatmul.mubr.bf16.gmra.mrb[0].mxu0 %v1050
      %v1092 = vpop.f32.mrb[0].mxu0
      %v1093 = vadd.f32 %v981, %v1092
      %v1094 = vpop.f32.mrb[0].mxu0
      %v1095 = vpop.f32.mrb[0].mxu0
      %v1096 = vadd.f32 %v982, %v1095
      %v1097 = vpop.f32.mrb[0].mxu0
      %1098 = vmatprep.mubr.bf16.mxu0 0
      %1099 = vmatmul.mubr.bf16.gmra.mrb[0].mxu0 %v1053
      %v1100 = vpop.f32.mrb[0].mxu0
      %v1101 = vadd.f32 %v983, %v1100
      %v1102 = vpop.f32.mrb[0].mxu0
      %v1103 = vpop.f32.mrb[0].mxu0
      %v1104 = vadd.f32 %v984, %v1103
      %v1105 = vpop.f32.mrb[0].mxu0
      %1106 = vdwg.mxu0
      %vm1107 = vcmask 64512
      %v1108 = vsel %vm1107, %v1032, -inf
      %1109 = vmax.xlane.f32.xlu0 %v1108
      %v1110 = vpop.xlane.xlu0 %1109
      %v1111 = vsel %vm1107, %v1035, -inf
      %1112 = vmax.xlane.f32.xlu0 %v1111
      %v1113 = vpop.xlane.xlu0 %1112
      %v1114 = vsel %vm1107, %v1040, -inf
      %1115 = vmax.xlane.f32.xlu0 %v1114
      %v1116 = vpop.xlane.xlu0 %1115
      %v1117 = vsel %vm1107, %v1043, -inf
      %1118 = vmax.xlane.f32.xlu0 %v1117
      %v1119 = vpop.xlane.xlu0 %1118
      %v1120 = vsel %vm1107, %v1093, -inf
      %1121 = vmax.xlane.f32.xlu0 %v1120
      %v1122 = vpop.xlane.xlu0 %1121
      %v1123 = vsel %vm1107, %v1096, -inf
      %1124 = vmax.xlane.f32.xlu0 %v1123
      %v1125 = vpop.xlane.xlu0 %1124
      %v1126 = vsel %vm1107, %v1101, -inf
      %1127 = vmax.xlane.f32.xlu0 %v1126
      %v1128 = vpop.xlane.xlu0 %1127
      %v1129 = vsel %vm1107, %v1104, -inf
      %1130 = vmax.xlane.f32.xlu0 %v1129
      %v1131 = vpop.xlane.xlu0 %1130
      %v1132 = vsub.f32 %v1032, %v1110
      %v1133 = vsub.f32 %v1035, %v1113
      %v1134 = vsub.f32 %v1040, %v1116
      %v1135 = vsub.f32 %v1043, %v1119
      %v1136 = vsub.f32 %v1093, %v1122
      %v1137 = vsub.f32 %v1096, %v1125
      %v1138 = vsub.f32 %v1101, %v1128
      %v1139 = vsub.f32 %v1104, %v1131
      %v1140 = vmul.f32 %v1132, 1.442695
      %v1141 = vpow.pop %v1140
      %v1142 = vmul.f32 %v1133, 1.442695
      %v1143 = vpow.pop %v1142
      %v1144 = vmul.f32 %v1134, 1.442695
      %v1145 = vpow.pop %v1144
      %v1146 = vmul.f32 %v1135, 1.442695
      %v1147 = vpow.pop %v1146
      %v1148 = vmul.f32 %v1136, 1.442695
      %v1149 = vpow.pop %v1148
      %v1150 = vmul.f32 %v1137, 1.442695
      %v1151 = vpow.pop %v1150
      %v1152 = vmul.f32 %v1138, 1.442695
      %v1153 = vpow.pop %v1152
      %v1154 = vmul.f32 %v1139, 1.442695
      %v1155 = vpow.pop %v1154
      %v1156 = vsel %vm1107, %v1141, 0.0
      %1157 = vadd.xlane.f32.xlu0 %v1156
      %v1158 = vpop.xlane.xlu0 %1157
      %v1159 = vsel %vm1107, %v1143, 0.0
      %1160 = vadd.xlane.f32.xlu0 %v1159
      %v1161 = vpop.xlane.xlu0 %1160
      %v1162 = vsel %vm1107, %v1145, 0.0
      %1163 = vadd.xlane.f32.xlu0 %v1162
      %v1164 = vpop.xlane.xlu0 %1163
      %v1165 = vsel %vm1107, %v1147, 0.0
      %1166 = vadd.xlane.f32.xlu0 %v1165
      %v1167 = vpop.xlane.xlu0 %1166
      %v1168 = vsel %vm1107, %v1149, 0.0
      %1169 = vadd.xlane.f32.xlu0 %v1168
      %v1170 = vpop.xlane.xlu0 %1169
      %v1171 = vsel %vm1107, %v1151, 0.0
      %1172 = vadd.xlane.f32.xlu0 %v1171
      %v1173 = vpop.xlane.xlu0 %1172
      %v1174 = vsel %vm1107, %v1153, 0.0
      %1175 = vadd.xlane.f32.xlu0 %v1174
      %v1176 = vpop.xlane.xlu0 %1175
      %v1177 = vsel %vm1107, %v1155, 0.0
      %1178 = vadd.xlane.f32.xlu0 %v1177
      %v1179 = vpop.xlane.xlu0 %1178
      %v1180 = vrcp.pop %v1158
      %v1181 = vrcp.pop %v1161
      %v1182 = vrcp.pop %v1164
      %v1183 = vrcp.pop %v1167
      %v1184 = vrcp.pop %v1170
      %v1185 = vrcp.pop %v1173
      %v1186 = vrcp.pop %v1176
      %v1187 = vrcp.pop %v1179
      %v1188 = vmul.f32 %v1141, %v1180
      %v1189 = vmul.f32 %v1143, %v1181
      %v1190 = vmul.f32 %v1145, %v1182
      %v1191 = vmul.f32 %v1147, %v1183
      %v1192 = vmul.f32 %v1149, %v1184
      %v1193 = vmul.f32 %v1151, %v1185
      %v1194 = vmul.f32 %v1153, %v1186
      %v1195 = vmul.f32 %v1155, %v1187
      %v1196 = vpack.c.bf16 %v1189, %v1188
      %v1197 = vpack.c.bf16 %v1191, %v1190
      %v1198 = vpack.c.bf16 %v1193, %v1192
      %v1199 = vpack.c.bf16 %v1195, %v1194
      %1200 = vrot.lane.b32.xlu0 %v979, 64
      %v1201 = vpop.permute.xlu0 %1200
      %v1203 = vsel %vm1107, %v1196, 0
      %v1206 = vsel %vm1107, %v1197, 0
      %vm1208 = vcmask 1043456
      %v1210 = vsel %vm1208, %v1201, 0
      %1212 = vmatprep.subr.bf16.mxu0 0
      %1213 = vmatpush1.bf16.msra.mxu0 %v1210
      %1214 = vmatprep.subr.bf16.mxu0 0
      %1215 = vmatpush1.bf16.msra.mxu0 0
      %1216 = vmatprep.subr.bf16.mxu0 0
      %1217 = vmatpush1.bf16.msra.mxu0 0
      %1218 = vmatprep.subr.bf16.mxu0 0
      %1219 = vmatpush1.bf16.msra.mxu0 0
      %1220 = vmatprep.subr.bf16.mxu0 0
      %1221 = vmatpush1.bf16.msra.mxu0 0
      %1222 = vmatprep.subr.bf16.mxu0 0
      %1223 = vmatpush1.bf16.msra.mxu0 0
      %1224 = vmatprep.subr.bf16.mxu0 0
      %1225 = vmatpush1.bf16.msra.mxu0 0
      %1226 = vmatprep.subr.bf16.mxu0 0
      %1227 = vmatpush1.bf16.msra.mxu0 0
      %1228 = vmatprep.subr.bf16.mxu0 0
      %1229 = vmatpush1.bf16.msra.mxu0 0
      %1230 = vmatprep.subr.bf16.mxu0 0
      %1231 = vmatpush1.bf16.msra.mxu0 0
      %1232 = vmatprep.subr.bf16.mxu0 0
      %1233 = vmatpush1.bf16.msra.mxu0 0
      %1234 = vmatprep.subr.bf16.mxu0 0
      %1235 = vmatpush1.bf16.msra.mxu0 0
      %1236 = vmatprep.subr.bf16.mxu0 0
      %1237 = vmatpush1.bf16.msra.mxu0 0
      %1238 = vmatprep.subr.bf16.mxu0 0
      %1239 = vmatpush1.bf16.msra.mxu0 0
      %1240 = vmatprep.subr.bf16.mxu0 0
      %1241 = vmatpush1.bf16.msra.mxu0 0
      %1242 = vmatprep.subr.bf16.mxu0 0
      %1243 = vmatpush1.bf16.msra.mxu0 0
      %1244 = vmatprep.mubr.bf16.mxu0 0
      %1245 = vmatmul.mubr.bf16.gmra.mrb[0].mxu0 %v1203
      %v1246 = vpop.f32.mrb[0].mxu0
      %v1247 = vadd.f32 0.0, %v1246
      %v1248 = vpop.f32.mrb[0].mxu0
      %v1249 = vpop.f32.mrb[0].mxu0
      %v1250 = vadd.f32 0.0, %v1249
      %v1251 = vpop.f32.mrb[0].mxu0
      %1252 = vmatprep.mubr.bf16.mxu0 0
      %1253 = vmatmul.mubr.bf16.gmra.mrb[0].mxu0 %v1206
      %v1254 = vpop.f32.mrb[0].mxu0
      %v1255 = vadd.f32 0.0, %v1254
      %v1256 = vpop.f32.mrb[0].mxu0
      %v1257 = vpop.f32.mrb[0].mxu0
      %v1258 = vadd.f32 0.0, %v1257
      %v1259 = vpop.f32.mrb[0].mxu0
      %1260 = vdwg.mxu0
      %1261 = vrot.lane.b32.xlu0 %v980, 64
      %v1262 = vpop.permute.xlu0 %1261
      %v1264 = vsel %vm1107, %v1198, 0
      %v1267 = vsel %vm1107, %v1199, 0
      %v1270 = vsel %vm1208, %v1262, 0
      %1272 = vmatprep.subr.bf16.mxu0 0
      %1273 = vmatpush1.bf16.msra.mxu0 %v1270
      %1274 = vmatprep.subr.bf16.mxu0 0
      %1275 = vmatpush1.bf16.msra.mxu0 0
      %1276 = vmatprep.subr.bf16.mxu0 0
      %1277 = vmatpush1.bf16.msra.mxu0 0
      %1278 = vmatprep.subr.bf16.mxu0 0
      %1279 = vmatpush1.bf16.msra.mxu0 0
      %1280 = vmatprep.subr.bf16.mxu0 0
      %1281 = vmatpush1.bf16.msra.mxu0 0
      %1282 = vmatprep.subr.bf16.mxu0 0
      %1283 = vmatpush1.bf16.msra.mxu0 0
      %1284 = vmatprep.subr.bf16.mxu0 0
      %1285 = vmatpush1.bf16.msra.mxu0 0
      %1286 = vmatprep.subr.bf16.mxu0 0
      %1287 = vmatpush1.bf16.msra.mxu0 0
      %1288 = vmatprep.subr.bf16.mxu0 0
      %1289 = vmatpush1.bf16.msra.mxu0 0
      %1290 = vmatprep.subr.bf16.mxu0 0
      %1291 = vmatpush1.bf16.msra.mxu0 0
      %1292 = vmatprep.subr.bf16.mxu0 0
      %1293 = vmatpush1.bf16.msra.mxu0 0
      %1294 = vmatprep.subr.bf16.mxu0 0
      %1295 = vmatpush1.bf16.msra.mxu0 0
      %1296 = vmatprep.subr.bf16.mxu0 0
      %1297 = vmatpush1.bf16.msra.mxu0 0
      %1298 = vmatprep.subr.bf16.mxu0 0
      %1299 = vmatpush1.bf16.msra.mxu0 0
      %1300 = vmatprep.subr.bf16.mxu0 0
      %1301 = vmatpush1.bf16.msra.mxu0 0
      %1302 = vmatprep.subr.bf16.mxu0 0
      %1303 = vmatpush1.bf16.msra.mxu0 0
      %1304 = vmatprep.mubr.bf16.mxu0 0
      %1305 = vmatmul.mubr.bf16.gmra.mrb[0].mxu0 %v1264
      %v1306 = vpop.f32.mrb[0].mxu0
      %v1307 = vadd.f32 0.0, %v1306
      %v1308 = vpop.f32.mrb[0].mxu0
      %v1309 = vpop.f32.mrb[0].mxu0
      %v1310 = vadd.f32 0.0, %v1309
      %v1311 = vpop.f32.mrb[0].mxu0
      %1312 = vmatprep.mubr.bf16.mxu0 0
      %1313 = vmatmul.mubr.bf16.gmra.mrb[0].mxu0 %v1267
      %v1314 = vpop.f32.mrb[0].mxu0
      %v1315 = vadd.f32 0.0, %v1314
      %v1316 = vpop.f32.mrb[0].mxu0
      %v1317 = vpop.f32.mrb[0].mxu0
      %v1318 = vadd.f32 0.0, %v1317
      %v1319 = vpop.f32.mrb[0].mxu0
      %1320 = vdwg.mxu0
      %v1321 = vmul.f32 %v1247, %v864
      %v1322 = vmul.f32 %v1250, %v865
      %v1323 = vmul.f32 %v1255, %v866
      %v1324 = vmul.f32 %v1258, %v867
      %v1325 = vmul.f32 %v1307, %v864
      %v1326 = vmul.f32 %v1310, %v865
      %v1327 = vmul.f32 %v1315, %v866
      %v1328 = vmul.f32 %v1318, %v867
      %v1329 = vadd.f32 %v1321, %v1322
      %v1330 = vadd.f32 %v1325, %v1326
      %v1331 = vadd.f32 %v1329, %v1323
      %v1332 = vadd.f32 %v1330, %v1327
      %v1333 = vadd.f32 %v1331, %v1324
      %v1334 = vadd.f32 %v1332, %v1328
      %v1335 = vpack.c.bf16 %v1334, %v1333
      %v1336 = vld [vmem:[%s726] sm:$0xff]
      %v1337 = vld [vmem:[%s726 + $0x8] sm:$0xff]
      %v1338 = vld [vmem:[%s726 + $0x10] sm:$0xff]
      %v1339 = vld [vmem:[%s726 + $0x18] sm:$0xff]
      %v1340 = vpack.c.bf16 %v1337, %v1336
      %v1341 = vpack.c.bf16 %v1339, %v1338
      %v1342 = vld [vmem:[%s729] sm:$0x1]
      %v1344 = vlaneseq
      %v1345 = vshrl.u32 %v1344, 7
      %v1346 = vsub.s32 0, %v1345
      %v1347 = vrot.slane %v1342, %v1346
      %v1350 = vsel %vm870, %v1335, 0
      %1352 = vmatprep.subr.bf16.mxu0 0
      %1353 = vmatpush1.bf16.msra.mxu0 %v1340
      %1354 = vmatprep.subr.bf16.mxu0 0
      %1355 = vmatpush1.bf16.msra.mxu0 %v1341
      %1356 = vmatprep.subr.bf16.mxu0 0
      %1357 = vmatpush1.bf16.msra.mxu0 0
      %1358 = vmatprep.subr.bf16.mxu0 0
      %1359 = vmatpush1.bf16.msra.mxu0 0
      %1360 = vmatprep.subr.bf16.mxu0 0
      %1361 = vmatpush1.bf16.msra.mxu0 0
      %1362 = vmatprep.subr.bf16.mxu0 0
      %1363 = vmatpush1.bf16.msra.mxu0 0
      %1364 = vmatprep.subr.bf16.mxu0 0
      %1365 = vmatpush1.bf16.msra.mxu0 0
      %1366 = vmatprep.subr.bf16.mxu0 0
      %1367 = vmatpush1.bf16.msra.mxu0 0
      %1368 = vmatprep.subr.bf16.mxu0 0
      %1369 = vmatpush1.bf16.msra.mxu0 0
      %1370 = vmatprep.subr.bf16.mxu0 0
      %1371 = vmatpush1.bf16.msra.mxu0 0
      %1372 = vmatprep.subr.bf16.mxu0 0
      %1373 = vmatpush1.bf16.msra.mxu0 0
      %1374 = vmatprep.subr.bf16.mxu0 0
      %1375 = vmatpush1.bf16.msra.mxu0 0
      %1376 = vmatprep.subr.bf16.mxu0 0
      %1377 = vmatpush1.bf16.msra.mxu0 0
      %1378 = vmatprep.subr.bf16.mxu0 0
      %1379 = vmatpush1.bf16.msra.mxu0 0
      %1380 = vmatprep.subr.bf16.mxu0 0
      %1381 = vmatpush1.bf16.msra.mxu0 0
      %1382 = vmatprep.subr.bf16.mxu0 0
      %1383 = vmatpush1.bf16.msra.mxu0 0
      %1384 = vmatprep.mubr.bf16.mxu0 0
      %1385 = vmatmul.mubr.bf16.gmra.mrb[0].mxu0 %v1350
      %v1386 = vpop.f32.mrb[0].mxu0
      %v1387 = vadd.f32 %v1347, %v1386
      %v1388 = vpop.f32.mrb[0].mxu0
      %v1389 = vpop.f32.mrb[0].mxu0
      %v1390 = vadd.f32 %v1347, %v1389
      %v1391 = vpop.f32.mrb[0].mxu0
      %1392 = vdwg.mxu0
      %v1393 = vadd.f32 %v862, %v1387
      %v1394 = vadd.f32 %v863, %v1390
      %v1395 = vld [vmem:[%s713] sm:$0x1]
      %v1396 = vld [vmem:[%s716] sm:$0x1]
      %v1397 = vsel %vm870, %v1393, 0.0
      %1398 = vadd.xlane.f32.xlu0 %v1397
      %v1399 = vpop.xlane.xlu0 %1398
      %v1400 = vsel %vm870, %v1394, 0.0
      %1401 = vadd.xlane.f32.xlu0 %v1400
      %v1402 = vpop.xlane.xlu0 %1401
      %v1403 = vmul.f32 %v1399, %v877
      %v1404 = vmul.f32 %v1402, %v877
      %v1405 = vsub.f32 %v1393, %v1403
      %v1406 = vsub.f32 %v1394, %v1404
      %v1407 = vmul.f32 %v1405, %v1405
      %v1408 = vmul.f32 %v1406, %v1406
      %v1409 = vsel %vm870, %v1407, 0.0
      %1410 = vadd.xlane.f32.xlu0 %v1409
      %v1411 = vpop.xlane.xlu0 %1410
      %v1412 = vsel %vm870, %v1408, 0.0
      %1413 = vadd.xlane.f32.xlu0 %v1412
      %v1414 = vpop.xlane.xlu0 %1413
      %v1415 = vmul.f32 %v1411, 0.032258064
      %v1416 = vmul.f32 %v1414, 0.032258064
      %v1417 = vadd.f32 %v1415, 1e-05
      %v1418 = vadd.f32 %v1416, 1e-05
      %v1419 = vrsqrt.pop %v1417
      %v1420 = vrsqrt.pop %v1418
      %v1421 = vmul.f32 %v1405, %v1419
      %v1422 = vmul.f32 %v1406, %v1420
      %v1424 = vlaneseq
      %v1425 = vshrl.u32 %v1424, 7
      %v1426 = vsub.s32 0, %v1425
      %v1427 = vrot.slane %v1395, %v1426
      %v1429 = vmul.f32 %v1427, %v1421
      %v1430 = vmul.f32 %v1427, %v1422
      %v1432 = vlaneseq
      %v1433 = vshrl.u32 %v1432, 7
      %v1434 = vsub.s32 0, %v1433
      %v1435 = vrot.slane %v1396, %v1434
      %v1437 = vadd.f32 %v1429, %v1435
      %v1438 = vadd.f32 %v1430, %v1435
      %v1439 = vpack.c.bf16 %v1438, %v1437
      %v1440 = vld [vmem:[%s734] sm:$0xff]
      %v1441 = vld [vmem:[%s734 + $0x8] sm:$0xff]
      %v1442 = vld [vmem:[%s734 + $0x10] sm:$0xff]
      %v1443 = vld [vmem:[%s734 + $0x18] sm:$0xff]
      %v1444 = vpack.c.bf16 %v1441, %v1440
      %v1445 = vpack.c.bf16 %v1443, %v1442
      %v1446 = vld [vmem:[%s737] sm:$0x1]
      %v1448 = vlaneseq
      %v1449 = vshrl.u32 %v1448, 7
      %v1450 = vsub.s32 0, %v1449
      %v1451 = vrot.slane %v1446, %v1450
      %v1454 = vsel %vm870, %v1439, 0
      %1456 = vmatprep.subr.bf16.mxu0 0
      %1457 = vmatpush1.bf16.msra.mxu0 %v1444
      %1458 = vmatprep.subr.bf16.mxu0 0
      %1459 = vmatpush1.bf16.msra.mxu0 %v1445
      %1460 = vmatprep.subr.bf16.mxu0 0
      %1461 = vmatpush1.bf16.msra.mxu0 0
      %1462 = vmatprep.subr.bf16.mxu0 0
      %1463 = vmatpush1.bf16.msra.mxu0 0
      %1464 = vmatprep.subr.bf16.mxu0 0
      %1465 = vmatpush1.bf16.msra.mxu0 0
      %1466 = vmatprep.subr.bf16.mxu0 0
      %1467 = vmatpush1.bf16.msra.mxu0 0
      %1468 = vmatprep.subr.bf16.mxu0 0
      %1469 = vmatpush1.bf16.msra.mxu0 0
      %1470 = vmatprep.subr.bf16.mxu0 0
      %1471 = vmatpush1.bf16.msra.mxu0 0
      %1472 = vmatprep.subr.bf16.mxu0 0
      %1473 = vmatpush1.bf16.msra.mxu0 0
      %1474 = vmatprep.subr.bf16.mxu0 0
      %1475 = vmatpush1.bf16.msra.mxu0 0
      %1476 = vmatprep.subr.bf16.mxu0 0
      %1477 = vmatpush1.bf16.msra.mxu0 0
      %1478 = vmatprep.subr.bf16.mxu0 0
      %1479 = vmatpush1.bf16.msra.mxu0 0
      %1480 = vmatprep.subr.bf16.mxu0 0
      %1481 = vmatpush1.bf16.msra.mxu0 0
      %1482 = vmatprep.subr.bf16.mxu0 0
      %1483 = vmatpush1.bf16.msra.mxu0 0
      %1484 = vmatprep.subr.bf16.mxu0 0
      %1485 = vmatpush1.bf16.msra.mxu0 0
      %1486 = vmatprep.subr.bf16.mxu0 0
      %1487 = vmatpush1.bf16.msra.mxu0 0
      %1488 = vmatprep.mubr.bf16.mxu0 0
      %1489 = vmatmul.mubr.bf16.gmra.mrb[0].mxu0 %v1454
      %v1490 = vpop.f32.mrb[0].mxu0
      %v1491 = vadd.f32 %v1451, %v1490
      %v1492 = vpop.f32.mrb[0].mxu0
      %v1493 = vpop.f32.mrb[0].mxu0
      %v1494 = vadd.f32 %v1451, %v1493
      %v1495 = vpop.f32.mrb[0].mxu0
      %1496 = vdwg.mxu0
      %v1497 = vmul.f32 %v1491, 0.5
      %v1498 = vmul.f32 %v1494, 0.5
      %v1499 = vmul.f32 %v1491, 0.044715
      %v1500 = vmul.f32 %v1494, 0.044715
      %v1501 = vmul.f32 %v1499, %v1491
      %v1502 = vmul.f32 %v1500, %v1494
      %v1503 = vmul.f32 %v1501, %v1491
      %v1504 = vmul.f32 %v1502, %v1494
      %v1505 = vadd.f32 %v1491, %v1503
      %v1506 = vadd.f32 %v1494, %v1504
      %v1507 = vmul.f32 %v1505, 0.7978846
      %v1508 = vmul.f32 %v1506, 0.7978846
      %v1509 = vtanh.pop %v1507
      %v1510 = vtanh.pop %v1508
      %v1511 = vadd.f32 %v1509, 1.0
      %v1512 = vadd.f32 %v1510, 1.0
      %v1513 = vmul.f32 %v1497, %v1511
      %v1514 = vmul.f32 %v1498, %v1512
      %v1515 = vpack.c.bf16 %v1514, %v1513
      %v1516 = vld [vmem:[%s742] sm:$0xff]
      %v1517 = vld [vmem:[%s742 + $0x8] sm:$0xff]
      %v1518 = vld [vmem:[%s742 + $0x10] sm:$0xff]
      %v1519 = vld [vmem:[%s742 + $0x18] sm:$0xff]
      %v1520 = vld [vmem:[%s742 + $0x20] sm:$0xff]
      %v1521 = vld [vmem:[%s742 + $0x28] sm:$0xff]
      %v1522 = vld [vmem:[%s742 + $0x30] sm:$0xff]
      %v1523 = vld [vmem:[%s742 + $0x38] sm:$0xff]
      %v1524 = vld [vmem:[%s742 + $0x40] sm:$0xff]
      %v1525 = vld [vmem:[%s742 + $0x48] sm:$0xff]
      %v1526 = vld [vmem:[%s742 + $0x50] sm:$0xff]
      %v1527 = vld [vmem:[%s742 + $0x58] sm:$0xff]
      %v1528 = vld [vmem:[%s742 + $0x60] sm:$0xff]
      %v1529 = vld [vmem:[%s742 + $0x68] sm:$0xff]
      %v1530 = vld [vmem:[%s742 + $0x70] sm:$0xff]
      %v1531 = vld [vmem:[%s742 + $0x78] sm:$0xff]
      %v1532 = vpack.c.bf16 %v1517, %v1516
      %v1533 = vpack.c.bf16 %v1519, %v1518
      %v1534 = vpack.c.bf16 %v1521, %v1520
      %v1535 = vpack.c.bf16 %v1523, %v1522
      %v1536 = vpack.c.bf16 %v1525, %v1524
      %v1537 = vpack.c.bf16 %v1527, %v1526
      %v1538 = vpack.c.bf16 %v1529, %v1528
      %v1539 = vpack.c.bf16 %v1531, %v1530
      %v1540 = vld [vmem:[%s745] sm:$0x1]
      %v1542 = vlaneseq
      %v1543 = vshrl.u32 %v1542, 7
      %v1544 = vsub.s32 0, %v1543
      %v1545 = vrot.slane %v1540, %v1544
      %1547 = vmatprep.subr.bf16.mxu0 0
      %1548 = vmatpush1.bf16.msra.mxu0 %v1532
      %1549 = vmatprep.subr.bf16.mxu0 0
      %1550 = vmatpush1.bf16.msra.mxu0 %v1533
      %1551 = vmatprep.subr.bf16.mxu0 0
      %1552 = vmatpush1.bf16.msra.mxu0 %v1534
      %1553 = vmatprep.subr.bf16.mxu0 0
      %1554 = vmatpush1.bf16.msra.mxu0 %v1535
      %1555 = vmatprep.subr.bf16.mxu0 0
      %1556 = vmatpush1.bf16.msra.mxu0 %v1536
      %1557 = vmatprep.subr.bf16.mxu0 0
      %1558 = vmatpush1.bf16.msra.mxu0 %v1537
      %1559 = vmatprep.subr.bf16.mxu0 0
      %1560 = vmatpush1.bf16.msra.mxu0 %v1538
      %1561 = vmatprep.subr.bf16.mxu0 0
      %1562 = vmatpush1.bf16.msra.mxu0 %v1539
      %1563 = vmatprep.subr.bf16.mxu0 0
      %1564 = vmatpush1.bf16.msra.mxu0 0
      %1565 = vmatprep.subr.bf16.mxu0 0
      %1566 = vmatpush1.bf16.msra.mxu0 0
      %1567 = vmatprep.subr.bf16.mxu0 0
      %1568 = vmatpush1.bf16.msra.mxu0 0
      %1569 = vmatprep.subr.bf16.mxu0 0
      %1570 = vmatpush1.bf16.msra.mxu0 0
      %1571 = vmatprep.subr.bf16.mxu0 0
      %1572 = vmatpush1.bf16.msra.mxu0 0
      %1573 = vmatprep.subr.bf16.mxu0 0
      %1574 = vmatpush1.bf16.msra.mxu0 0
      %1575 = vmatprep.subr.bf16.mxu0 0
      %1576 = vmatpush1.bf16.msra.mxu0 0
      %1577 = vmatprep.subr.bf16.mxu0 0
      %1578 = vmatpush1.bf16.msra.mxu0 0
      %1579 = vmatprep.mubr.bf16.mxu0 0
      %1580 = vmatmul.mubr.bf16.gmra.mrb[0].mxu0 %v1515
      %v1581 = vpop.f32.mrb[0].mxu0
      %v1582 = vadd.f32 %v1545, %v1581
      %v1583 = vpop.f32.mrb[0].mxu0
      %v1584 = vpop.f32.mrb[0].mxu0
      %v1585 = vadd.f32 %v1545, %v1584
      %v1586 = vpop.f32.mrb[0].mxu0
      %1587 = vdwg.mxu0
      %v1588 = vadd.f32 %v1393, %v1582
      %v1589 = vadd.f32 %v1394, %v1585
      %1590 = vst.msk [vmem:[#allocation2] sm:$0xff] %vm870, %v1588
      %1591 = vst.msk [vmem:[#allocation2 + $0x8] sm:$0xff] %vm870, %v1589
      %p1592 = scmp.eq.s32.totalorder %s30, 1
      // Predicated region
      $region101: #{gpt_forward.1} parent=95 // pred_check
        %p1593 = pneg %p1592
      $region102: #{gpt_forward.1} parent=95 // pred_check_branch
        %1595 = sbr.rel (%p1593) target = $region104
      $region103: #{gpt_forward.1} parent=95 // pred_region
        %v1596 = vld [vmem:[%s16] sm:$0x1]
        %v1597 = vld [vmem:[%s17] sm:$0x1]
        %v1598 = vsel %vm870, %v1588, 0.0
        %1599 = vadd.xlane.f32.xlu0 %v1598
        %v1600 = vpop.xlane.xlu0 %1599
        %v1601 = vsel %vm870, %v1589, 0.0
        %1602 = vadd.xlane.f32.xlu0 %v1601
        %v1603 = vpop.xlane.xlu0 %1602
        %v1604 = vmul.f32 %v1600, %v877
        %v1605 = vmul.f32 %v1603, %v877
        %v1606 = vsub.f32 %v1588, %v1604
        %v1607 = vsub.f32 %v1589, %v1605
        %v1608 = vmul.f32 %v1606, %v1606
        %v1609 = vmul.f32 %v1607, %v1607
        %v1610 = vsel %vm870, %v1608, 0.0
        %1611 = vadd.xlane.f32.xlu0 %v1610
        %v1612 = vpop.xlane.xlu0 %1611
        %v1613 = vsel %vm870, %v1609, 0.0
        %1614 = vadd.xlane.f32.xlu0 %v1613
        %v1615 = vpop.xlane.xlu0 %1614
        %v1616 = vmul.f32 %v1612, 0.032258064
        %v1617 = vmul.f32 %v1615, 0.032258064
        %v1618 = vadd.f32 %v1616, 1e-05
        %v1619 = vadd.f32 %v1617, 1e-05
        %v1620 = vrsqrt.pop %v1618
        %v1621 = vrsqrt.pop %v1619
        %v1622 = vmul.f32 %v1606, %v1620
        %v1623 = vmul.f32 %v1607, %v1621
        %v1625 = vlaneseq
        %v1626 = vshrl.u32 %v1625, 7
        %v1627 = vsub.s32 0, %v1626
        %v1628 = vrot.slane %v1596, %v1627
        %v1630 = vmul.f32 %v1628, %v1622
        %v1631 = vmul.f32 %v1628, %v1623
        %v1633 = vlaneseq
        %v1634 = vshrl.u32 %v1633, 7
        %v1635 = vsub.s32 0, %v1634
        %v1636 = vrot.slane %v1597, %v1635
        %v1638 = vadd.f32 %v1630, %v1636
        %v1639 = vadd.f32 %v1631, %v1636
        %v1640 = vpack.c.bf16 %v1639, %v1638
        %v1641 = vld [vmem:[%s18] sm:$0xff]
        %v1642 = vld [vmem:[%s18 + $0x8] sm:$0xff]
        %v1643 = vld [vmem:[%s18 + $0x10] sm:$0xff]
        %v1644 = vld [vmem:[%s18 + $0x18] sm:$0xff]
        %v1645 = vpack.c.bf16 %v1642, %v1641
        %v1646 = vpack.c.bf16 %v1644, %v1643
        %v1648 = vsel %vm870, %v1640, 0
        %1650 = vmatprep.subr.bf16.mxu0 0
        %1651 = vmatpush1.bf16.msra.mxu0 %v1645
        %1652 = vmatprep.subr.bf16.mxu0 0
        %1653 = vmatpush1.bf16.msra.mxu0 %v1646
        %1654 = vmatprep.subr.bf16.mxu0 0
        %1655 = vmatpush1.bf16.msra.mxu0 0
        %1656 = vmatprep.subr.bf16.mxu0 0
        %1657 = vmatpush1.bf16.msra.mxu0 0
        %1658 = vmatprep.subr.bf16.mxu0 0
        %1659 = vmatpush1.bf16.msra.mxu0 0
        %1660 = vmatprep.subr.bf16.mxu0 0
        %1661 = vmatpush1.bf16.msra.mxu0 0
        %1662 = vmatprep.subr.bf16.mxu0 0
        %1663 = vmatpush1.bf16.msra.mxu0 0
        %1664 = vmatprep.subr.bf16.mxu0 0
        %1665 = vmatpush1.bf16.msra.mxu0 0
        %1666 = vmatprep.subr.bf16.mxu0 0
        %1667 = vmatpush1.bf16.msra.mxu0 0
        %1668 = vmatprep.subr.bf16.mxu0 0
        %1669 = vmatpush1.bf16.msra.mxu0 0
        %1670 = vmatprep.subr.bf16.mxu0 0
        %1671 = vmatpush1.bf16.msra.mxu0 0
        %1672 = vmatprep.subr.bf16.mxu0 0
        %1673 = vmatpush1.bf16.msra.mxu0 0
        %1674 = vmatprep.subr.bf16.mxu0 0
        %1675 = vmatpush1.bf16.msra.mxu0 0
        %1676 = vmatprep.subr.bf16.mxu0 0
        %1677 = vmatpush1.bf16.msra.mxu0 0
        %1678 = vmatprep.subr.bf16.mxu0 0
        %1679 = vmatpush1.bf16.msra.mxu0 0
        %1680 = vmatprep.subr.bf16.mxu0 0
        %1681 = vmatpush1.bf16.msra.mxu0 0
        %1682 = vmatprep.mubr.bf16.mxu0 0
        %1683 = vmatmul.mubr.bf16.gmra.mrb[0].mxu0 %v1648
        %v1684 = vpop.f32.mrb[0].mxu0
        %v1685 = vadd.f32 0.0, %v1684
        %v1686 = vpop.f32.mrb[0].mxu0
        %v1687 = vpop.f32.mrb[0].mxu0
        %v1688 = vadd.f32 0.0, %v1687
        %v1689 = vpop.f32.mrb[0].mxu0
        %1690 = vdwg.mxu0
        %1691 = vst [vmem:[%s19] sm:$0xff] %v1685
        %1692 = vst [vmem:[%s19 + $0x8] sm:$0xff] %v1688
      $region104: #{gpt_forward.1} parent=95 // pred_fallthru
        _
      // Predicated region
      $region105: #{gpt_forward.1} parent=95 // pred_check
        %p1693 = pneg %p497
      $region106: #{gpt_forward.1} parent=95 // pred_check_branch
        %1695 = sbr.rel (%p1693) target = $region108
      $region107: #{gpt_forward.1} parent=95 // pred_region
        _
      $region108: #{gpt_forward.1} parent=95 // pred_fallthru
        _
      // Predicated region
      $region109: #{gpt_forward.1} parent=95 // pred_check
        %p1696 = pneg %p497
      $region110: #{gpt_forward.1} parent=95 // pred_check_branch
        %1698 = sbr.rel (%p1696) target = $region112
      $region111: #{gpt_forward.1} parent=95 // pred_region
        _
      $region112: #{gpt_forward.1} parent=95 // pred_fallthru
        _
    $region96: #{gpt_forward.1} parent=5 // pred_fallthru
      _
    %p1699 = scmp.le.s32.totalorder 2, %s25
    // Predicated region
    $region113: #{gpt_forward.1} parent=5 // pred_check
      %p1700 = pneg %p1699
    $region114: #{gpt_forward.1} parent=5 // pred_check_branch
      %1702 = sbr.rel (%p1700) target = $region116
    $region115: #{gpt_forward.1} parent=5 // pred_region
      %s1703 = ssub.s32 %s25, 2
    $region116: #{gpt_forward.1} parent=5 // pred_fallthru
      _
  $region6: #{gpt_forward.1} parent=0 // loop_footer
    %s29 = sadd.s32 1, %s25
  $region7: #{gpt_forward.1} parent=0 // loop_footer_branch
    %24 = sbr.rel target = $region3
  $region8: #{gpt_forward.1} parent=0 // loop_exit
    _

</llo_original>
